<compile_context>
chip_gen: v6e
topology: v6e:2x2x1
jax: 0.10.0
libtpu: 0.0.40
codegen_flags: <defaults>
</compile_context>

<pallas_src>
import functools
import math

import jax
import jax.numpy as jnp
from jax.experimental import pallas as pl
from jax.experimental.pallas import tpu as pltpu


def _layernorm(x, gamma, beta, eps=1e-5):
    # x: (R, D) f32; gamma/beta: (1, D). Biased variance, like torch.nn.LayerNorm.
    mean = jnp.mean(x, axis=-1, keepdims=True)
    var = jnp.mean((x - mean) ** 2, axis=-1, keepdims=True)
    return (x - mean) * jax.lax.rsqrt(var + eps) * gamma + beta


def encoder_stack_kernel(x_ref, wqkv_ref, wfc_ref, w1_ref, w2_ref, vec_ref,
                         o_ref, *, h):
    """One grid step == (one batch tile, one encoder layer).

    The activation is resident in o_ref across the (innermost) layer axis.
    """
    layer = pl.program_id(1)
    bt, S, D = x_ref.shape
    R = bt * S
    d = D // h
    FC = w1_ref.shape[2]

    # First layer of this batch tile: seed the resident output block with x.
    @pl.when(layer == 0)
    def _():
        o_ref[...] = x_ref[...]

    xf = o_ref[...].reshape(R, D).astype(jnp.float32)         # (R, D) f32

    # Packed per-layer vectors: rows = [b1, b2, g_att, be_att, g_ff, be_ff, 0, 0]
    vec = vec_ref[0]                                          # (8, max(D,FC)) f32
    b1 = vec[0:1, :FC]
    b2 = vec[1:2, :D]
    g_att = vec[2:3, :D]
    be_att = vec[3:4, :D]
    g_ff = vec[4:5, :D]
    be_ff = vec[5:6, :D]

    # ---- fused Q/K/V projection (bf16 operands, f32 accumulate) ----
    # 1/sqrt(h) is already folded into the Q columns of Wqkv.
    qkv = jnp.dot(xf.astype(jnp.bfloat16), wqkv_ref[0],
                  preferred_element_type=jnp.float32)          # (R, 3D) f32
    Q = qkv[:, :D].reshape(bt, S, D).astype(jnp.bfloat16)
    K = qkv[:, D:2 * D].reshape(bt, S, D).astype(jnp.bfloat16)
    V = qkv[:, 2 * D:].reshape(bt, S, D).astype(jnp.bfloat16)

    # ---- multi-head attention: batched over the batch tile, static head loop.
    # The output projection is fused into the loop (no lane-axis concat).
    wfc = wfc_ref[0]                                           # (D, D) bf16
    att = jnp.zeros((R, D), jnp.float32)
    for i in range(h):
        lo = i * d
        q_h = Q[:, :, lo:lo + d]                               # (bt, S, d) bf16
        k_h = K[:, :, lo:lo + d]
        v_h = V[:, :, lo:lo + d]
        s = jnp.einsum('bqd,bkd->bqk', q_h, k_h,
                       preferred_element_type=jnp.float32)     # (bt, S, S) f32
        s = s - jnp.max(s, axis=-1, keepdims=True)
        p = jnp.exp(s)
        p = p * pl.reciprocal(jnp.sum(p, axis=-1, keepdims=True), approx=True)
        head = jnp.einsum('bqk,bkd->bqd', p.astype(jnp.bfloat16), v_h,
                          preferred_element_type=jnp.float32)  # (bt, S, d) f32
        att = att + jnp.dot(head.reshape(R, d).astype(jnp.bfloat16),
                            wfc[lo:lo + d, :],
                            preferred_element_type=jnp.float32)

    # residual + LayerNorm (attention sub-block) -- f32 math
    norm_att = _layernorm(att + xf, g_att, be_att)

    # feed-forward (Linear -> ReLU -> Linear, with biases)
    h1 = jnp.maximum(
        jnp.dot(norm_att.astype(jnp.bfloat16), w1_ref[0],
                preferred_element_type=jnp.float32) + b1, 0.0)
    h2 = (jnp.dot(h1.astype(jnp.bfloat16), w2_ref[0],
                  preferred_element_type=jnp.float32) + b2)

    # residual + LayerNorm (FF sub-block)
    out = _layernorm(h2 + norm_att, g_ff, be_ff)

    # keep the activation resident in the output block for the next layer;
    # HBM writeback only happens when the output block index changes.
    o_ref[...] = out.reshape(bt, S, D).astype(o_ref.dtype)


def transformer_encoder(x, layer_params, h, *, batch_tile=None):
    """Full encoder stack in one pallas_call. x: (B, S, D) float32."""
    B, S, D = x.shape
    assert x.dtype == jnp.float32, "resident-output accumulator path needs f32 I/O"
    L = len(layer_params)
    FC = layer_params[0]["w1"].shape[1]
    assert D % h == 0
    bt = B if batch_tile is None else batch_tile
    assert B % bt == 0
    scale = math.sqrt(float(h))   # matches torch.sqrt(FloatTensor([h]))

    # Stack per-layer weights along a leading layer axis; fuse Q/K/V, fold
    # 1/scale into the Q columns (in f32), then cast matmul weights to bf16.
    wqkv = jnp.stack([jnp.concatenate(
        [p["wq"] / scale, p["wk"], p["wv"]], axis=1)
        for p in layer_params]).astype(jnp.bfloat16)           # (L, D, 3D)
    wfc = jnp.stack([p["wfc"] for p in layer_params]).astype(jnp.bfloat16)
    w1 = jnp.stack([p["w1"] for p in layer_params]).astype(jnp.bfloat16)
    w2 = jnp.stack([p["w2"] for p in layer_params]).astype(jnp.bfloat16)

    # Pack the six small per-layer vectors into one (L, 8, DV) f32 array.
    DV = max(D, FC)
    pad = lambda v: jnp.pad(v, ((0, 0), (0, DV - v.shape[1])))
    vec = jnp.stack([
        jnp.concatenate([pad(p["b1"]), pad(p["b2"]), pad(p["g_att"]),
                         pad(p["be_att"]), pad(p["g_ff"]), pad(p["be_ff"]),
                         jnp.zeros((2, DV), jnp.float32)], axis=0)
        for p in layer_params])                                 # (L, 8, DV)

    # Resident-set estimate -> explicit scoped-VMEM limit (double-buffered
    # bf16 weights + x/out activation blocks + packed vectors + temporaries).
    w_bytes = (D * 3 * D + D * D + 2 * D * FC) * 2              # bf16, per layer
    act_bytes = bt * S * D * 4 * 2                              # x + out blocks
    vec_bytes = 8 * DV * 4
    tmp_bytes = bt * S * (7 * D + FC) * 4 + 2 * bt * S * S * 4
    est = 2 * (w_bytes + act_bytes + vec_bytes) + tmp_bytes
    vmem_limit = int(min(max(3 * est, 32 * 1024 * 1024), 64 * 1024 * 1024))

    per_layer = lambda shp: pl.BlockSpec((1,) + shp, lambda b, l: (l, 0, 0))
    per_batch = lambda shp: pl.BlockSpec(shp, lambda b, l: (b, 0, 0))

    kernel = functools.partial(encoder_stack_kernel, h=h)
    return pl.pallas_call(
        kernel,
        out_shape=jax.ShapeDtypeStruct((B, S, D), jnp.float32),
        grid=(B // bt, L),
        in_specs=[
            per_batch((bt, S, D)),       # x (resident across the layer axis)
            per_layer((D, 3 * D)),       # Wqkv (bf16, scale folded into Q part)
            per_layer((D, D)),           # Wfc  (bf16)
            per_layer((D, FC)),          # W1   (bf16)
            per_layer((FC, D)),          # W2   (bf16)
            per_layer((8, DV)),          # packed [b1,b2,g_att,be_att,g_ff,be_ff]
        ],
        out_specs=per_batch((bt, S, D)),  # also the cross-layer accumulator
        compiler_params=pltpu.CompilerParams(
            dimension_semantics=("parallel", "arbitrary"),
            vmem_limit_bytes=vmem_limit),
    )(x, wqkv, wfc, w1, w2, vec)


# ------------------------- pure-JAX f32 reference ---------------------------
def _ref_cell(x, p, h):
    B, S, D = x.shape
    d = D // h
    scale = math.sqrt(float(h))
    hp = jax.lax.Precision.HIGHEST
    Q = jnp.dot(x, p["wq"], precision=hp).reshape(B, S, h, d).transpose(0, 2, 1, 3)
    K = jnp.dot(x, p["wk"], precision=hp).reshape(B, S, h, d).transpose(0, 2, 1, 3)
    V = jnp.dot(x, p["wv"], precision=hp).reshape(B, S, h, d).transpose(0, 2, 1, 3)
    alpha = jax.nn.softmax(
        jnp.einsum('bhqd,bhkd->bhqk', Q, K, precision=hp) / scale, axis=-1)
    att = jnp.einsum('bhqk,bhkd->bhqd', alpha, V,
                     precision=hp).transpose(0, 2, 1, 3).reshape(B, S, D)
    att = jnp.dot(att, p["wfc"], precision=hp)
    na = _layernorm(att + x, p["g_att"], p["be_att"])
    ff = jnp.dot(jnp.maximum(jnp.dot(na, p["w1"], precision=hp) + p["b1"], 0.0),
                 p["w2"], precision=hp) + p["b2"]
    return _layernorm(ff + na, p["g_ff"], p["be_ff"])


def transformer_encoder_ref(x, layer_params, h):
    for p in layer_params:
        x = _ref_cell(x, p, h)
    return x


# ------------------------------- params -------------------------------------
def init_layer_params(key, in_size, fc_size):
    """Deterministic synthetic parameters, stored pre-transposed (in, out)."""
    ks = jax.random.split(key, 8)
    s = 0.1
    return {
        "wq": jax.random.normal(ks[0], (in_size, in_size), jnp.float32) * s,
        "wk": jax.random.normal(ks[1], (in_size, in_size), jnp.float32) * s,
        "wv": jax.random.normal(ks[2], (in_size, in_size), jnp.float32) * s,
        "wfc": jax.random.normal(ks[3], (in_size, in_size), jnp.float32) * s,
        "w1": jax.random.normal(ks[4], (in_size, fc_size), jnp.float32) * s,
        "b1": jax.random.normal(ks[5], (1, fc_size), jnp.float32) * s,
        "w2": jax.random.normal(ks[6], (fc_size, in_size), jnp.float32) * s,
        "b2": jax.random.normal(ks[7], (1, in_size), jnp.float32) * s,
        # LayerNorm affine params (PyTorch default init: ones / zeros)
        "g_att": jnp.ones((1, in_size), jnp.float32),
        "be_att": jnp.zeros((1, in_size), jnp.float32),
        "g_ff": jnp.ones((1, in_size), jnp.float32),
        "be_ff": jnp.zeros((1, in_size), jnp.float32),
    }


if __name__ == "__main__":
    # small shapes: batch=2, seq=8, in_size=32, fc_size=64, n_layers=2, h=4
    B, S, D = 2, 8, 32
    FC, N_LAYERS, H = 64, 2, 4
    assert D % H == 0

    key = jax.random.PRNGKey(0)
    k_in, *k_layers = jax.random.split(key, N_LAYERS + 1)

    x = jax.random.normal(k_in, (B, S, D), jnp.float32)
    layer_params = [init_layer_params(k, D, FC) for k in k_layers]

    # batch_tile=1 exercises the 2-D (parallel batch, arbitrary layer) grid.
    out = jax.block_until_ready(transformer_encoder(x, layer_params, H,
                                                    batch_tile=1))
    assert out.shape == (B, S, D)

    ref = jax.block_until_ready(transformer_encoder_ref(x, layer_params, H))
    # Kernel uses bf16 MXU operands (f32 accumulation) vs an all-f32 reference,
    # so the comparison tolerance is loosened accordingly.
    assert jnp.allclose(out, ref, atol=5e-2, rtol=5e-2), (
        float(jnp.max(jnp.abs(out - ref))))

    print("KERNEL_OK")
</pallas_src>

<mosaic_0001>
module attributes {stable_mosaic.version = 11 : i64} {
  func.func @encoder_stack_kernel(%arg0: i32, %arg1: i32, %arg2: memref<1x8x32xf32, #tpu.memory_space<vmem>>, %arg3: memref<1x32x96xbf16, #tpu.memory_space<vmem>>, %arg4: memref<1x32x32xbf16, #tpu.memory_space<vmem>>, %arg5: memref<1x32x64xbf16, #tpu.memory_space<vmem>>, %arg6: memref<1x64x32xbf16, #tpu.memory_space<vmem>>, %arg7: memref<1x8x64xf32, #tpu.memory_space<vmem>>, %arg8: memref<1x8x32xf32, #tpu.memory_space<vmem>>) attributes {dimension_semantics = [#tpu.dimension_semantics<parallel>, #tpu.dimension_semantics<arbitrary>], iteration_bounds = array<i64: 2, 2>, scalar_prefetch = 0 : i64, scratch_operands = 0 : i64, tpu.core_type = #tpu.core_type<tc>, window_params = [{transform_indices = @transform_0, window_bounds = array<i64: 1, 8, 32>}, {transform_indices = @transform_1, window_bounds = array<i64: 1, 32, 96>}, {transform_indices = @transform_2, window_bounds = array<i64: 1, 32, 32>}, {transform_indices = @transform_3, window_bounds = array<i64: 1, 32, 64>}, {transform_indices = @transform_4, window_bounds = array<i64: 1, 64, 32>}, {transform_indices = @transform_5, window_bounds = array<i64: 1, 8, 64>}, {transform_indices = @transform_6, window_bounds = array<i64: 1, 8, 32>}]} {
    %c0_i32 = arith.constant 0 : i32
    %0 = arith.cmpi eq, %arg1, %c0_i32 : i32
    %1 = arith.extui %0 : i1 to i32
    %c0_i32_0 = arith.constant 0 : i32
    %2 = arith.cmpi ne, %1, %c0_i32_0 : i32
    scf.if %2 {
      %c0_55 = arith.constant 0 : index
      %c0_56 = arith.constant 0 : index
      %c0_57 = arith.constant 0 : index
      %175 = vector.load %arg2[%c0_55, %c0_56, %c0_57] : memref<1x8x32xf32, #tpu.memory_space<vmem>>, vector<1x8x32xf32>
      %c0_58 = arith.constant 0 : index
      %c0_59 = arith.constant 0 : index
      %c0_60 = arith.constant 0 : index
      %176 = vector.load %arg8[%c0_58, %c0_59, %c0_60] : memref<1x8x32xf32, #tpu.memory_space<vmem>>, vector<1x8x32xf32>
      tpu.vector_store %arg8[%c0_58, %c0_59, %c0_60], %175 {strides = array<i32>} : memref<1x8x32xf32, #tpu.memory_space<vmem>>, vector<1x8x32xf32>,
    } else {
    }
    %c0 = arith.constant 0 : index
    %c0_1 = arith.constant 0 : index
    %c0_2 = arith.constant 0 : index
    %3 = vector.load %arg8[%c0, %c0_1, %c0_2] : memref<1x8x32xf32, #tpu.memory_space<vmem>>, vector<1x8x32xf32>
    %4 = vector.shape_cast %3 : vector<1x8x32xf32> to vector<8x32xf32>
    %c0_3 = arith.constant 0 : index
    %c0_4 = arith.constant 0 : index
    %c0_5 = arith.constant 0 : index
    %5 = vector.load %arg7[%c0_3, %c0_4, %c0_5] : memref<1x8x64xf32, #tpu.memory_space<vmem>>, vector<1x8x64xf32>
    %6 = vector.shape_cast %5 : vector<1x8x64xf32> to vector<8x64xf32>
    %7 = vector.extract_strided_slice %6 {offsets = [0, 0], sizes = [1, 64], strides = [1, 1]} : vector<8x64xf32> to vector<1x64xf32>
    %8 = vector.extract_strided_slice %6 {offsets = [1, 0], sizes = [1, 32], strides = [1, 1]} : vector<8x64xf32> to vector<1x32xf32>
    %9 = vector.extract_strided_slice %6 {offsets = [2, 0], sizes = [1, 32], strides = [1, 1]} : vector<8x64xf32> to vector<1x32xf32>
    %10 = vector.extract_strided_slice %6 {offsets = [3, 0], sizes = [1, 32], strides = [1, 1]} : vector<8x64xf32> to vector<1x32xf32>
    %11 = vector.extract_strided_slice %6 {offsets = [4, 0], sizes = [1, 32], strides = [1, 1]} : vector<8x64xf32> to vector<1x32xf32>
    %12 = vector.extract_strided_slice %6 {offsets = [5, 0], sizes = [1, 32], strides = [1, 1]} : vector<8x64xf32> to vector<1x32xf32>
    %13 = arith.truncf %4 : vector<8x32xf32> to vector<8x32xbf16>
    %c0_6 = arith.constant 0 : index
    %c0_7 = arith.constant 0 : index
    %c0_8 = arith.constant 0 : index
    %14 = vector.load %arg3[%c0_6, %c0_7, %c0_8] : memref<1x32x96xbf16, #tpu.memory_space<vmem>>, vector<1x32x96xbf16>
    %15 = vector.shape_cast %14 : vector<1x32x96xbf16> to vector<32x96xbf16>
    %cst = arith.constant dense<0.000000e+00> : vector<8x96xf32>
    %16 = tpu.matmul %13, %15, %cst {dimension_numbers = #tpu.dot_dimension_numbers<[1], [0], [0], [1], [0, 0, 1, 1], [], []>} : vector<8x32xbf16>, vector<32x96xbf16>, vector<8x96xf32> -> vector<8x96xf32>
    %17 = vector.extract_strided_slice %16 {offsets = [0, 0], sizes = [8, 32], strides = [1, 1]} : vector<8x96xf32> to vector<8x32xf32>
    %18 = vector.shape_cast %17 : vector<8x32xf32> to vector<1x8x32xf32>
    %19 = arith.truncf %18 : vector<1x8x32xf32> to vector<1x8x32xbf16>
    %20 = vector.extract_strided_slice %16 {offsets = [0, 32], sizes = [8, 32], strides = [1, 1]} : vector<8x96xf32> to vector<8x32xf32>
    %21 = vector.shape_cast %20 : vector<8x32xf32> to vector<1x8x32xf32>
    %22 = arith.truncf %21 : vector<1x8x32xf32> to vector<1x8x32xbf16>
    %23 = vector.extract_strided_slice %16 {offsets = [0, 64], sizes = [8, 32], strides = [1, 1]} : vector<8x96xf32> to vector<8x32xf32>
    %24 = vector.shape_cast %23 : vector<8x32xf32> to vector<1x8x32xf32>
    %25 = arith.truncf %24 : vector<1x8x32xf32> to vector<1x8x32xbf16>
    %c0_9 = arith.constant 0 : index
    %c0_10 = arith.constant 0 : index
    %c0_11 = arith.constant 0 : index
    %26 = vector.load %arg4[%c0_9, %c0_10, %c0_11] : memref<1x32x32xbf16, #tpu.memory_space<vmem>>, vector<1x32x32xbf16>
    %27 = vector.shape_cast %26 : vector<1x32x32xbf16> to vector<32x32xbf16>
    %cst_12 = arith.constant 0.000000e+00 : f32
    %28 = vector.broadcast %cst_12 : f32 to vector<8x32xf32>
    %29 = vector.extract_strided_slice %19 {offsets = [0, 0, 0], sizes = [1, 8, 8], strides = [1, 1, 1]} : vector<1x8x32xbf16> to vector<1x8x8xbf16>
    %30 = vector.extract_strided_slice %22 {offsets = [0, 0, 0], sizes = [1, 8, 8], strides = [1, 1, 1]} : vector<1x8x32xbf16> to vector<1x8x8xbf16>
    %31 = vector.extract_strided_slice %25 {offsets = [0, 0, 0], sizes = [1, 8, 8], strides = [1, 1, 1]} : vector<1x8x32xbf16> to vector<1x8x8xbf16>
    "tpu.trace_start"() <{level = 10 : i32, message = "bqd,bkd->bqk"}> : () -> ()
    %cst_13 = arith.constant dense<0.000000e+00> : vector<1x8x8xf32>
    %32 = tpu.matmul %29, %30, %cst_13 {dimension_numbers = #tpu.dot_dimension_numbers<[2], [2], [1], [1], [0, 0, 0, 1, 1, 1], [0], [0]>} : vector<1x8x8xbf16>, vector<1x8x8xbf16>, vector<1x8x8xf32> -> vector<1x8x8xf32>
    "tpu.trace_stop"() : () -> ()
    %cst_14 = arith.constant dense<0xFF800000> : vector<1x8xf32>
    %33 = vector.multi_reduction <maximumf>, %32, %cst_14 [2] : vector<1x8x8xf32> to vector<1x8xf32>
    %34 = vector.shape_cast %33 : vector<1x8xf32> to vector<1x8x1xf32>
    %35 = vector.broadcast %34 : vector<1x8x1xf32> to vector<1x8x8xf32>
    %36 = arith.subf %32, %35 : vector<1x8x8xf32>
    %37 = math.exp %36 : vector<1x8x8xf32>
    %cst_15 = arith.constant dense<0.000000e+00> : vector<1x8xf32>
    %38 = vector.multi_reduction <add>, %37, %cst_15 [2] : vector<1x8x8xf32> to vector<1x8xf32>
    %39 = vector.shape_cast %38 : vector<1x8xf32> to vector<1x8x1xf32>
    %40 = tpu.reciprocal %39 {approx = true} : vector<1x8x1xf32> -> vector<1x8x1xf32>
    %41 = vector.broadcast %40 : vector<1x8x1xf32> to vector<1x8x8xf32>
    %42 = arith.mulf %37, %41 : vector<1x8x8xf32>
    %43 = arith.truncf %42 : vector<1x8x8xf32> to vector<1x8x8xbf16>
    "tpu.trace_start"() <{level = 10 : i32, message = "bqk,bkd->bqd"}> : () -> ()
    %cst_16 = arith.constant dense<0.000000e+00> : vector<1x8x8xf32>
    %44 = tpu.matmul %43, %31, %cst_16 {dimension_numbers = #tpu.dot_dimension_numbers<[2], [1], [1], [2], [0, 0, 0, 1, 1, 2], [0], [0]>} : vector<1x8x8xbf16>, vector<1x8x8xbf16>, vector<1x8x8xf32> -> vector<1x8x8xf32>
    "tpu.trace_stop"() : () -> ()
    %45 = vector.shape_cast %44 : vector<1x8x8xf32> to vector<8x8xf32>
    %46 = arith.truncf %45 : vector<8x8xf32> to vector<8x8xbf16>
    %47 = vector.extract_strided_slice %27 {offsets = [0, 0], sizes = [8, 32], strides = [1, 1]} : vector<32x32xbf16> to vector<8x32xbf16>
    %cst_17 = arith.constant dense<0.000000e+00> : vector<8x32xf32>
    %48 = tpu.matmul %46, %47, %cst_17 {dimension_numbers = #tpu.dot_dimension_numbers<[1], [0], [0], [1], [0, 0, 1, 1], [], []>} : vector<8x8xbf16>, vector<8x32xbf16>, vector<8x32xf32> -> vector<8x32xf32>
    %49 = arith.addf %28, %48 : vector<8x32xf32>
    %50 = vector.extract_strided_slice %19 {offsets = [0, 0, 8], sizes = [1, 8, 8], strides = [1, 1, 1]} : vector<1x8x32xbf16> to vector<1x8x8xbf16>
    %51 = vector.extract_strided_slice %22 {offsets = [0, 0, 8], sizes = [1, 8, 8], strides = [1, 1, 1]} : vector<1x8x32xbf16> to vector<1x8x8xbf16>
    %52 = vector.extract_strided_slice %25 {offsets = [0, 0, 8], sizes = [1, 8, 8], strides = [1, 1, 1]} : vector<1x8x32xbf16> to vector<1x8x8xbf16>
    "tpu.trace_start"() <{level = 10 : i32, message = "bqd,bkd->bqk"}> : () -> ()
    %cst_18 = arith.constant dense<0.000000e+00> : vector<1x8x8xf32>
    %53 = tpu.matmul %50, %51, %cst_18 {dimension_numbers = #tpu.dot_dimension_numbers<[2], [2], [1], [1], [0, 0, 0, 1, 1, 1], [0], [0]>} : vector<1x8x8xbf16>, vector<1x8x8xbf16>, vector<1x8x8xf32> -> vector<1x8x8xf32>
    "tpu.trace_stop"() : () -> ()
    %cst_19 = arith.constant dense<0xFF800000> : vector<1x8xf32>
    %54 = vector.multi_reduction <maximumf>, %53, %cst_19 [2] : vector<1x8x8xf32> to vector<1x8xf32>
    %55 = vector.shape_cast %54 : vector<1x8xf32> to vector<1x8x1xf32>
    %56 = vector.broadcast %55 : vector<1x8x1xf32> to vector<1x8x8xf32>
    %57 = arith.subf %53, %56 : vector<1x8x8xf32>
    %58 = math.exp %57 : vector<1x8x8xf32>
    %cst_20 = arith.constant dense<0.000000e+00> : vector<1x8xf32>
    %59 = vector.multi_reduction <add>, %58, %cst_20 [2] : vector<1x8x8xf32> to vector<1x8xf32>
    %60 = vector.shape_cast %59 : vector<1x8xf32> to vector<1x8x1xf32>
    %61 = tpu.reciprocal %60 {approx = true} : vector<1x8x1xf32> -> vector<1x8x1xf32>
    %62 = vector.broadcast %61 : vector<1x8x1xf32> to vector<1x8x8xf32>
    %63 = arith.mulf %58, %62 : vector<1x8x8xf32>
    %64 = arith.truncf %63 : vector<1x8x8xf32> to vector<1x8x8xbf16>
    "tpu.trace_start"() <{level = 10 : i32, message = "bqk,bkd->bqd"}> : () -> ()
    %cst_21 = arith.constant dense<0.000000e+00> : vector<1x8x8xf32>
    %65 = tpu.matmul %64, %52, %cst_21 {dimension_numbers = #tpu.dot_dimension_numbers<[2], [1], [1], [2], [0, 0, 0, 1, 1, 2], [0], [0]>} : vector<1x8x8xbf16>, vector<1x8x8xbf16>, vector<1x8x8xf32> -> vector<1x8x8xf32>
    "tpu.trace_stop"() : () -> ()
    %66 = vector.shape_cast %65 : vector<1x8x8xf32> to vector<8x8xf32>
    %67 = arith.truncf %66 : vector<8x8xf32> to vector<8x8xbf16>
    %68 = vector.extract_strided_slice %27 {offsets = [8, 0], sizes = [8, 32], strides = [1, 1]} : vector<32x32xbf16> to vector<8x32xbf16>
    %cst_22 = arith.constant dense<0.000000e+00> : vector<8x32xf32>
    %69 = tpu.matmul %67, %68, %cst_22 {dimension_numbers = #tpu.dot_dimension_numbers<[1], [0], [0], [1], [0, 0, 1, 1], [], []>} : vector<8x8xbf16>, vector<8x32xbf16>, vector<8x32xf32> -> vector<8x32xf32>
    %70 = arith.addf %49, %69 : vector<8x32xf32>
    %71 = vector.extract_strided_slice %19 {offsets = [0, 0, 16], sizes = [1, 8, 8], strides = [1, 1, 1]} : vector<1x8x32xbf16> to vector<1x8x8xbf16>
    %72 = vector.extract_strided_slice %22 {offsets = [0, 0, 16], sizes = [1, 8, 8], strides = [1, 1, 1]} : vector<1x8x32xbf16> to vector<1x8x8xbf16>
    %73 = vector.extract_strided_slice %25 {offsets = [0, 0, 16], sizes = [1, 8, 8], strides = [1, 1, 1]} : vector<1x8x32xbf16> to vector<1x8x8xbf16>
    "tpu.trace_start"() <{level = 10 : i32, message = "bqd,bkd->bqk"}> : () -> ()
    %cst_23 = arith.constant dense<0.000000e+00> : vector<1x8x8xf32>
    %74 = tpu.matmul %71, %72, %cst_23 {dimension_numbers = #tpu.dot_dimension_numbers<[2], [2], [1], [1], [0, 0, 0, 1, 1, 1], [0], [0]>} : vector<1x8x8xbf16>, vector<1x8x8xbf16>, vector<1x8x8xf32> -> vector<1x8x8xf32>
    "tpu.trace_stop"() : () -> ()
    %cst_24 = arith.constant dense<0xFF800000> : vector<1x8xf32>
    %75 = vector.multi_reduction <maximumf>, %74, %cst_24 [2] : vector<1x8x8xf32> to vector<1x8xf32>
    %76 = vector.shape_cast %75 : vector<1x8xf32> to vector<1x8x1xf32>
    %77 = vector.broadcast %76 : vector<1x8x1xf32> to vector<1x8x8xf32>
    %78 = arith.subf %74, %77 : vector<1x8x8xf32>
    %79 = math.exp %78 : vector<1x8x8xf32>
    %cst_25 = arith.constant dense<0.000000e+00> : vector<1x8xf32>
    %80 = vector.multi_reduction <add>, %79, %cst_25 [2] : vector<1x8x8xf32> to vector<1x8xf32>
    %81 = vector.shape_cast %80 : vector<1x8xf32> to vector<1x8x1xf32>
    %82 = tpu.reciprocal %81 {approx = true} : vector<1x8x1xf32> -> vector<1x8x1xf32>
    %83 = vector.broadcast %82 : vector<1x8x1xf32> to vector<1x8x8xf32>
    %84 = arith.mulf %79, %83 : vector<1x8x8xf32>
    %85 = arith.truncf %84 : vector<1x8x8xf32> to vector<1x8x8xbf16>
    "tpu.trace_start"() <{level = 10 : i32, message = "bqk,bkd->bqd"}> : () -> ()
    %cst_26 = arith.constant dense<0.000000e+00> : vector<1x8x8xf32>
    %86 = tpu.matmul %85, %73, %cst_26 {dimension_numbers = #tpu.dot_dimension_numbers<[2], [1], [1], [2], [0, 0, 0, 1, 1, 2], [0], [0]>} : vector<1x8x8xbf16>, vector<1x8x8xbf16>, vector<1x8x8xf32> -> vector<1x8x8xf32>
    "tpu.trace_stop"() : () -> ()
    %87 = vector.shape_cast %86 : vector<1x8x8xf32> to vector<8x8xf32>
    %88 = arith.truncf %87 : vector<8x8xf32> to vector<8x8xbf16>
    %89 = vector.extract_strided_slice %27 {offsets = [16, 0], sizes = [8, 32], strides = [1, 1]} : vector<32x32xbf16> to vector<8x32xbf16>
    %cst_27 = arith.constant dense<0.000000e+00> : vector<8x32xf32>
    %90 = tpu.matmul %88, %89, %cst_27 {dimension_numbers = #tpu.dot_dimension_numbers<[1], [0], [0], [1], [0, 0, 1, 1], [], []>} : vector<8x8xbf16>, vector<8x32xbf16>, vector<8x32xf32> -> vector<8x32xf32>
    %91 = arith.addf %70, %90 : vector<8x32xf32>
    %92 = vector.extract_strided_slice %19 {offsets = [0, 0, 24], sizes = [1, 8, 8], strides = [1, 1, 1]} : vector<1x8x32xbf16> to vector<1x8x8xbf16>
    %93 = vector.extract_strided_slice %22 {offsets = [0, 0, 24], sizes = [1, 8, 8], strides = [1, 1, 1]} : vector<1x8x32xbf16> to vector<1x8x8xbf16>
    %94 = vector.extract_strided_slice %25 {offsets = [0, 0, 24], sizes = [1, 8, 8], strides = [1, 1, 1]} : vector<1x8x32xbf16> to vector<1x8x8xbf16>
    "tpu.trace_start"() <{level = 10 : i32, message = "bqd,bkd->bqk"}> : () -> ()
    %cst_28 = arith.constant dense<0.000000e+00> : vector<1x8x8xf32>
    %95 = tpu.matmul %92, %93, %cst_28 {dimension_numbers = #tpu.dot_dimension_numbers<[2], [2], [1], [1], [0, 0, 0, 1, 1, 1], [0], [0]>} : vector<1x8x8xbf16>, vector<1x8x8xbf16>, vector<1x8x8xf32> -> vector<1x8x8xf32>
    "tpu.trace_stop"() : () -> ()
    %cst_29 = arith.constant dense<0xFF800000> : vector<1x8xf32>
    %96 = vector.multi_reduction <maximumf>, %95, %cst_29 [2] : vector<1x8x8xf32> to vector<1x8xf32>
    %97 = vector.shape_cast %96 : vector<1x8xf32> to vector<1x8x1xf32>
    %98 = vector.broadcast %97 : vector<1x8x1xf32> to vector<1x8x8xf32>
    %99 = arith.subf %95, %98 : vector<1x8x8xf32>
    %100 = math.exp %99 : vector<1x8x8xf32>
    %cst_30 = arith.constant dense<0.000000e+00> : vector<1x8xf32>
    %101 = vector.multi_reduction <add>, %100, %cst_30 [2] : vector<1x8x8xf32> to vector<1x8xf32>
    %102 = vector.shape_cast %101 : vector<1x8xf32> to vector<1x8x1xf32>
    %103 = tpu.reciprocal %102 {approx = true} : vector<1x8x1xf32> -> vector<1x8x1xf32>
    %104 = vector.broadcast %103 : vector<1x8x1xf32> to vector<1x8x8xf32>
    %105 = arith.mulf %100, %104 : vector<1x8x8xf32>
    %106 = arith.truncf %105 : vector<1x8x8xf32> to vector<1x8x8xbf16>
    "tpu.trace_start"() <{level = 10 : i32, message = "bqk,bkd->bqd"}> : () -> ()
    %cst_31 = arith.constant dense<0.000000e+00> : vector<1x8x8xf32>
    %107 = tpu.matmul %106, %94, %cst_31 {dimension_numbers = #tpu.dot_dimension_numbers<[2], [1], [1], [2], [0, 0, 0, 1, 1, 2], [0], [0]>} : vector<1x8x8xbf16>, vector<1x8x8xbf16>, vector<1x8x8xf32> -> vector<1x8x8xf32>
    "tpu.trace_stop"() : () -> ()
    %108 = vector.shape_cast %107 : vector<1x8x8xf32> to vector<8x8xf32>
    %109 = arith.truncf %108 : vector<8x8xf32> to vector<8x8xbf16>
    %110 = vector.extract_strided_slice %27 {offsets = [24, 0], sizes = [8, 32], strides = [1, 1]} : vector<32x32xbf16> to vector<8x32xbf16>
    %cst_32 = arith.constant dense<0.000000e+00> : vector<8x32xf32>
    %111 = tpu.matmul %109, %110, %cst_32 {dimension_numbers = #tpu.dot_dimension_numbers<[1], [0], [0], [1], [0, 0, 1, 1], [], []>} : vector<8x8xbf16>, vector<8x32xbf16>, vector<8x32xf32> -> vector<8x32xf32>
    %112 = arith.addf %91, %111 : vector<8x32xf32>
    %113 = arith.addf %112, %4 : vector<8x32xf32>
    %cst_33 = arith.constant dense<0.000000e+00> : vector<8xf32>
    %114 = vector.multi_reduction <add>, %113, %cst_33 [1] : vector<8x32xf32> to vector<8xf32>
    %115 = vector.shape_cast %114 : vector<8xf32> to vector<8x1xf32>
    %cst_34 = arith.constant 3.200000e+01 : f32
    %116 = vector.broadcast %cst_34 : f32 to vector<8x1xf32>
    %117 = arith.divf %115, %116 : vector<8x1xf32>
    %118 = vector.broadcast %117 : vector<8x1xf32> to vector<8x32xf32>
    %119 = arith.subf %113, %118 : vector<8x32xf32>
    %120 = arith.mulf %119, %119 : vector<8x32xf32>
    %cst_35 = arith.constant dense<0.000000e+00> : vector<8xf32>
    %121 = vector.multi_reduction <add>, %120, %cst_35 [1] : vector<8x32xf32> to vector<8xf32>
    %122 = vector.shape_cast %121 : vector<8xf32> to vector<8x1xf32>
    %cst_36 = arith.constant 3.200000e+01 : f32
    %123 = vector.broadcast %cst_36 : f32 to vector<8x1xf32>
    %124 = arith.divf %122, %123 : vector<8x1xf32>
    %125 = vector.broadcast %117 : vector<8x1xf32> to vector<8x32xf32>
    %126 = arith.subf %113, %125 : vector<8x32xf32>
    %cst_37 = arith.constant 9.99999974E-6 : f32
    %127 = vector.broadcast %cst_37 : f32 to vector<8x1xf32>
    %128 = arith.addf %124, %127 : vector<8x1xf32>
    %129 = math.rsqrt %128 : vector<8x1xf32>
    %130 = vector.broadcast %129 : vector<8x1xf32> to vector<8x32xf32>
    %131 = arith.mulf %126, %130 : vector<8x32xf32>
    %132 = vector.broadcast %9 : vector<1x32xf32> to vector<8x32xf32>
    %133 = arith.mulf %131, %132 : vector<8x32xf32>
    %134 = vector.broadcast %10 : vector<1x32xf32> to vector<8x32xf32>
    %135 = arith.addf %133, %134 : vector<8x32xf32>
    %136 = arith.truncf %135 : vector<8x32xf32> to vector<8x32xbf16>
    %c0_38 = arith.constant 0 : index
    %c0_39 = arith.constant 0 : index
    %c0_40 = arith.constant 0 : index
    %137 = vector.load %arg5[%c0_38, %c0_39, %c0_40] : memref<1x32x64xbf16, #tpu.memory_space<vmem>>, vector<1x32x64xbf16>
    %138 = vector.shape_cast %137 : vector<1x32x64xbf16> to vector<32x64xbf16>
    %cst_41 = arith.constant dense<0.000000e+00> : vector<8x64xf32>
    %139 = tpu.matmul %136, %138, %cst_41 {dimension_numbers = #tpu.dot_dimension_numbers<[1], [0], [0], [1], [0, 0, 1, 1], [], []>} : vector<8x32xbf16>, vector<32x64xbf16>, vector<8x64xf32> -> vector<8x64xf32>
    %140 = vector.broadcast %7 : vector<1x64xf32> to vector<8x64xf32>
    %141 = arith.addf %139, %140 : vector<8x64xf32>
    %cst_42 = arith.constant 0.000000e+00 : f32
    %142 = vector.broadcast %cst_42 : f32 to vector<8x64xf32>
    %143 = arith.maximumf %141, %142 : vector<8x64xf32>
    %144 = arith.truncf %143 : vector<8x64xf32> to vector<8x64xbf16>
    %c0_43 = arith.constant 0 : index
    %c0_44 = arith.constant 0 : index
    %c0_45 = arith.constant 0 : index
    %145 = vector.load %arg6[%c0_43, %c0_44, %c0_45] : memref<1x64x32xbf16, #tpu.memory_space<vmem>>, vector<1x64x32xbf16>
    %146 = vector.shape_cast %145 : vector<1x64x32xbf16> to vector<64x32xbf16>
    %cst_46 = arith.constant dense<0.000000e+00> : vector<8x32xf32>
    %147 = tpu.matmul %144, %146, %cst_46 {dimension_numbers = #tpu.dot_dimension_numbers<[1], [0], [0], [1], [0, 0, 1, 1], [], []>} : vector<8x64xbf16>, vector<64x32xbf16>, vector<8x32xf32> -> vector<8x32xf32>
    %148 = vector.broadcast %8 : vector<1x32xf32> to vector<8x32xf32>
    %149 = arith.addf %147, %148 : vector<8x32xf32>
    %150 = arith.addf %149, %135 : vector<8x32xf32>
    %cst_47 = arith.constant dense<0.000000e+00> : vector<8xf32>
    %151 = vector.multi_reduction <add>, %150, %cst_47 [1] : vector<8x32xf32> to vector<8xf32>
    %152 = vector.shape_cast %151 : vector<8xf32> to vector<8x1xf32>
    %cst_48 = arith.constant 3.200000e+01 : f32
    %153 = vector.broadcast %cst_48 : f32 to vector<8x1xf32>
    %154 = arith.divf %152, %153 : vector<8x1xf32>
    %155 = vector.broadcast %154 : vector<8x1xf32> to vector<8x32xf32>
    %156 = arith.subf %150, %155 : vector<8x32xf32>
    %157 = arith.mulf %156, %156 : vector<8x32xf32>
    %cst_49 = arith.constant dense<0.000000e+00> : vector<8xf32>
    %158 = vector.multi_reduction <add>, %157, %cst_49 [1] : vector<8x32xf32> to vector<8xf32>
    %159 = vector.shape_cast %158 : vector<8xf32> to vector<8x1xf32>
    %cst_50 = arith.constant 3.200000e+01 : f32
    %160 = vector.broadcast %cst_50 : f32 to vector<8x1xf32>
    %161 = arith.divf %159, %160 : vector<8x1xf32>
    %162 = vector.broadcast %154 : vector<8x1xf32> to vector<8x32xf32>
    %163 = arith.subf %150, %162 : vector<8x32xf32>
    %cst_51 = arith.constant 9.99999974E-6 : f32
    %164 = vector.broadcast %cst_51 : f32 to vector<8x1xf32>
    %165 = arith.addf %161, %164 : vector<8x1xf32>
    %166 = math.rsqrt %165 : vector<8x1xf32>
    %167 = vector.broadcast %166 : vector<8x1xf32> to vector<8x32xf32>
    %168 = arith.mulf %163, %167 : vector<8x32xf32>
    %169 = vector.broadcast %11 : vector<1x32xf32> to vector<8x32xf32>
    %170 = arith.mulf %168, %169 : vector<8x32xf32>
    %171 = vector.broadcast %12 : vector<1x32xf32> to vector<8x32xf32>
    %172 = arith.addf %170, %171 : vector<8x32xf32>
    %173 = vector.shape_cast %172 : vector<8x32xf32> to vector<1x8x32xf32>
    %c0_52 = arith.constant 0 : index
    %c0_53 = arith.constant 0 : index
    %c0_54 = arith.constant 0 : index
    %174 = vector.load %arg8[%c0_52, %c0_53, %c0_54] : memref<1x8x32xf32, #tpu.memory_space<vmem>>, vector<1x8x32xf32>
    tpu.vector_store %arg8[%c0_52, %c0_53, %c0_54], %173 {strides = array<i32>} : memref<1x8x32xf32, #tpu.memory_space<vmem>>, vector<1x8x32xf32>,
    return
  }
  func.func @transform_0(%arg0: i32, %arg1: i32) -> (i32, i32, i32) {
    %c0_i32 = arith.constant 0 : i32
    %c0_i32_0 = arith.constant 0 : i32
    %c0_i32_1 = arith.constant 0 : i32
    return %arg0, %c0_i32, %c0_i32_0 : i32, i32, i32
  }
  func.func @transform_1(%arg0: i32, %arg1: i32) -> (i32, i32, i32) {
    %c0_i32 = arith.constant 0 : i32
    %c0_i32_0 = arith.constant 0 : i32
    %c0_i32_1 = arith.constant 0 : i32
    return %arg1, %c0_i32, %c0_i32_0 : i32, i32, i32
  }
  func.func @transform_2(%arg0: i32, %arg1: i32) -> (i32, i32, i32) {
    %c0_i32 = arith.constant 0 : i32
    %c0_i32_0 = arith.constant 0 : i32
    %c0_i32_1 = arith.constant 0 : i32
    return %arg1, %c0_i32, %c0_i32_0 : i32, i32, i32
  }
  func.func @transform_3(%arg0: i32, %arg1: i32) -> (i32, i32, i32) {
    %c0_i32 = arith.constant 0 : i32
    %c0_i32_0 = arith.constant 0 : i32
    %c0_i32_1 = arith.constant 0 : i32
    return %arg1, %c0_i32, %c0_i32_0 : i32, i32, i32
  }
  func.func @transform_4(%arg0: i32, %arg1: i32) -> (i32, i32, i32) {
    %c0_i32 = arith.constant 0 : i32
    %c0_i32_0 = arith.constant 0 : i32
    %c0_i32_1 = arith.constant 0 : i32
    return %arg1, %c0_i32, %c0_i32_0 : i32, i32, i32
  }
  func.func @transform_5(%arg0: i32, %arg1: i32) -> (i32, i32, i32) {
    %c0_i32 = arith.constant 0 : i32
    %c0_i32_0 = arith.constant 0 : i32
    %c0_i32_1 = arith.constant 0 : i32
    return %arg1, %c0_i32, %c0_i32_0 : i32, i32, i32
  }
  func.func @transform_6(%arg0: i32, %arg1: i32) -> (i32, i32, i32) {
    %c0_i32 = arith.constant 0 : i32
    %c0_i32_0 = arith.constant 0 : i32
    %c0_i32_1 = arith.constant 0 : i32
    return %arg0, %c0_i32, %c0_i32_0 : i32, i32, i32
  }
}

</mosaic_0001>

<llo_original>
// kernel: tpu_custom_call.1
$region0: #{tpu_custom_call.1}
  #allocation0 [shape = 'u32[]', space=smem, size = 0x4, offset = 0x4, fixed_abs, tag = 'smem constant byte address 0x4 - core index']
  #allocation1 [shape = 'u32[144,128]{1,0:T(1,128)}', space=vmem, size = 0x12000, scoped, tag = 'internal scratch']
  %s0 = inlined_call_operand.hbm [shape: f32[2,8,32], index: 0, kind: input, shape index: {}]
  %s1 = inlined_call_operand.vmem [shape: bf16[2,32,96], index: 1, kind: input, shape index: {}]
  %s2 = inlined_call_operand.vmem [shape: bf16[2,32,32], index: 2, kind: input, shape index: {}]
  %s3 = inlined_call_operand.vmem [shape: bf16[2,32,64], index: 3, kind: input, shape index: {}]
  %s4 = inlined_call_operand.vmem [shape: bf16[2,64,32], index: 4, kind: input, shape index: {}]
  %s5 = inlined_call_operand.hbm [shape: f32[2,8,64], index: 5, kind: input, shape index: {}]
  %s6 = inlined_call_operand.hbm [shape: f32[2,8,32], index: 6, kind: output, shape index: {}]
  %s7 = sld [smem:[#allocation0]]
  $region69: #{tpu_custom_call.1} parent=0
    _
  %s9 = ssub.s32 1, %s7
  %s10 = scalar_select 0, %s9, %s7
  $region1: #{tpu_custom_call.1} parent=0
    #allocation2 [shape = 'u8[8192]{0}', space=vmem, size = 0x2000, scoped, tag = 'input window, operand 0']
    #allocation3 [shape = 's32[2]{0}', space=sflag, size = 0x8, scoped, tag = 'scoped memory for tpu_custom_call.1']
    #allocation4 [shape = 's32[2]{0}', space=sflag, size = 0x8, scoped, tag = 'scoped memory for tpu_custom_call.1']
    #allocation5 [shape = 'u8[8192]{0}', space=vmem, size = 0x2000, scoped, tag = 'input window, operand 5']
    #allocation6 [shape = 's32[2]{0}', space=sflag, size = 0x8, scoped, tag = 'scoped memory for tpu_custom_call.1']
    #allocation7 [shape = 'u8[8192]{0}', space=vmem, size = 0x2000, scoped, tag = 'output window, operand 0']
    %11 = vsyncpa [#allocation3], 0
    %s12 = scalar_lea.sflag [#allocation3], 1
    %13 = vsyncpa %s12, 0
    %14 = vsyncpa [#allocation6], 0
    %s15 = scalar_lea.sflag [#allocation6], 1
    %16 = vsyncpa %s15, 0
    %17 = vsyncpa [#allocation4], 0
    %s18 = scalar_lea.sflag [#allocation4], 1
    %19 = vsyncpa %s18, 0
    loop: start=0, step=1, limit=6
    $region2: #{tpu_custom_call.1} parent=1 // loop_pre_header
      _
    $region3: #{tpu_custom_call.1} parent=1 // loop_header
      %s21 = sphi 0, %s25
      %p22 = scmp.ge.s32.totalorder %s21, 6
      %s28 = sphi 0, %s40
      %s29 = sphi 0, %s36
      %s30 = sphi 0, %s28
      %s31 = sphi 0, %s29
      %s32 = sphi 0, %s30
      %s33 = sphi 0, %s31
      %s43 = sphi 0, %s45
      %s46 = sphi 0, %s43
      %s47 = sphi 0, %s46
      %s63 = sphi 0, %s47
      %s69 = sphi 0, %s71
      %s72 = sphi 0, %s69
      %s73 = sphi 0, %s72
      %s89 = sphi 0, %s73
      %s95 = sphi 0, %s97
      %s98 = sphi 0, %s95
      %s99 = sphi 0, %s98
      %s115 = sphi 0, %s99
      %s121 = sphi 0, %s123
      %s124 = sphi 0, %s121
      %s125 = sphi 0, %s124
      %s141 = sphi 0, %s125
      %s147 = sphi 0, %s149
      %s150 = sphi 0, %s147
      %s151 = sphi 0, %s150
      %s167 = sphi 0, %s151
      %s173 = sphi 0, %s175
      %s176 = sphi 0, %s173
      %s177 = sphi 0, %s176
      %s193 = sphi 0, %s177
      %s199 = sphi 0, %s201
      %s202 = sphi 0, %s199
      %s203 = sphi 0, %s202
      %s219 = sphi 0, %s203
    $region4: #{tpu_custom_call.1} parent=1 // loop_header_branch
      %24 = sbr.rel (%p22) target = $region8
    $region5: #{tpu_custom_call.1} parent=1 // loop_body
      %s26 = ssub.s32 %s21, 1
      %s27 = ssub.s32 %s21, 2
      %s34 = sadd.s32 1, %s29
      %p35 = scmp.ge.s32.totalorder %s34, 2
      %s36 = scalar_select %p35, 0, %s34
      %s37 = sadd.s32 1, %s28
      %s38 = scalar_select %p35, %s37, %s28
      %p39 = scmp.ge.s32.totalorder %s38, 2
      %s40 = scalar_select %p39, 0, %s38
      %s41 = ssub.s32 %s28, %s40
      %p42 = scmp.eq.s32.totalorder %s41, 0
      %s44 = sadd.s32 %s43, 1
      %s45 = scalar_select %p42, %s43, %s44
      %p48 = pneg %p42
      %p49 = scmp.eq.s32.totalorder %s21, 3
      %p50 = por %p48, %p49
      %p51 = scmp.ne.s32.totalorder %s43, %s46
      %p52 = scmp.eq.s32.totalorder %s21, 0
      %p53 = por %p51, %p52
      %p54 = scmp.ne.s32.totalorder %s43, %s46
      %p55 = scmp.eq.s32.totalorder %s26, 3
      %p56 = por %p54, %p55
      %p57 = scmp.ne.s32.totalorder %s46, %s47
      %p58 = scmp.eq.s32.totalorder %s26, 0
      %p59 = por %p57, %p58
      %p60 = scmp.ne.s32.totalorder %s46, %s47
      %p61 = scmp.eq.s32.totalorder %s27, 3
      %p62 = por %p60, %p61
      %p64 = scmp.ne.s32.totalorder %s47, %s63
      %p65 = scmp.eq.s32.totalorder %s27, 0
      %p66 = por %p64, %p65
      %s67 = ssub.s32 %s29, %s36
      %p68 = scmp.eq.s32.totalorder %s67, 0
      %s70 = sadd.s32 %s69, 1
      %s71 = scalar_select %p68, %s69, %s70
      %p74 = pneg %p68
      %p75 = scmp.eq.s32.totalorder %s21, 3
      %p76 = por %p74, %p75
      %p77 = scmp.ne.s32.totalorder %s69, %s72
      %p78 = scmp.eq.s32.totalorder %s21, 0
      %p79 = por %p77, %p78
      %p80 = scmp.ne.s32.totalorder %s69, %s72
      %p81 = scmp.eq.s32.totalorder %s26, 3
      %p82 = por %p80, %p81
      %p83 = scmp.ne.s32.totalorder %s72, %s73
      %p84 = scmp.eq.s32.totalorder %s26, 0
      %p85 = por %p83, %p84
      %p86 = scmp.ne.s32.totalorder %s72, %s73
      %p87 = scmp.eq.s32.totalorder %s27, 3
      %p88 = por %p86, %p87
      %p90 = scmp.ne.s32.totalorder %s73, %s89
      %p91 = scmp.eq.s32.totalorder %s27, 0
      %p92 = por %p90, %p91
      %s93 = ssub.s32 %s29, %s36
      %p94 = scmp.eq.s32.totalorder %s93, 0
      %s96 = sadd.s32 %s95, 1
      %s97 = scalar_select %p94, %s95, %s96
      %p100 = pneg %p94
      %p101 = scmp.eq.s32.totalorder %s21, 3
      %p102 = por %p100, %p101
      %p103 = scmp.ne.s32.totalorder %s95, %s98
      %p104 = scmp.eq.s32.totalorder %s21, 0
      %p105 = por %p103, %p104
      %p106 = scmp.ne.s32.totalorder %s95, %s98
      %p107 = scmp.eq.s32.totalorder %s26, 3
      %p108 = por %p106, %p107
      %p109 = scmp.ne.s32.totalorder %s98, %s99
      %p110 = scmp.eq.s32.totalorder %s26, 0
      %p111 = por %p109, %p110
      %p112 = scmp.ne.s32.totalorder %s98, %s99
      %p113 = scmp.eq.s32.totalorder %s27, 3
      %p114 = por %p112, %p113
      %p116 = scmp.ne.s32.totalorder %s99, %s115
      %p117 = scmp.eq.s32.totalorder %s27, 0
      %p118 = por %p116, %p117
      %s119 = ssub.s32 %s29, %s36
      %p120 = scmp.eq.s32.totalorder %s119, 0
      %s122 = sadd.s32 %s121, 1
      %s123 = scalar_select %p120, %s121, %s122
      %p126 = pneg %p120
      %p127 = scmp.eq.s32.totalorder %s21, 3
      %p128 = por %p126, %p127
      %p129 = scmp.ne.s32.totalorder %s121, %s124
      %p130 = scmp.eq.s32.totalorder %s21, 0
      %p131 = por %p129, %p130
      %p132 = scmp.ne.s32.totalorder %s121, %s124
      %p133 = scmp.eq.s32.totalorder %s26, 3
      %p134 = por %p132, %p133
      %p135 = scmp.ne.s32.totalorder %s124, %s125
      %p136 = scmp.eq.s32.totalorder %s26, 0
      %p137 = por %p135, %p136
      %p138 = scmp.ne.s32.totalorder %s124, %s125
      %p139 = scmp.eq.s32.totalorder %s27, 3
      %p140 = por %p138, %p139
      %p142 = scmp.ne.s32.totalorder %s125, %s141
      %p143 = scmp.eq.s32.totalorder %s27, 0
      %p144 = por %p142, %p143
      %s145 = ssub.s32 %s29, %s36
      %p146 = scmp.eq.s32.totalorder %s145, 0
      %s148 = sadd.s32 %s147, 1
      %s149 = scalar_select %p146, %s147, %s148
      %p152 = pneg %p146
      %p153 = scmp.eq.s32.totalorder %s21, 3
      %p154 = por %p152, %p153
      %p155 = scmp.ne.s32.totalorder %s147, %s150
      %p156 = scmp.eq.s32.totalorder %s21, 0
      %p157 = por %p155, %p156
      %p158 = scmp.ne.s32.totalorder %s147, %s150
      %p159 = scmp.eq.s32.totalorder %s26, 3
      %p160 = por %p158, %p159
      %p161 = scmp.ne.s32.totalorder %s150, %s151
      %p162 = scmp.eq.s32.totalorder %s26, 0
      %p163 = por %p161, %p162
      %p164 = scmp.ne.s32.totalorder %s150, %s151
      %p165 = scmp.eq.s32.totalorder %s27, 3
      %p166 = por %p164, %p165
      %p168 = scmp.ne.s32.totalorder %s151, %s167
      %p169 = scmp.eq.s32.totalorder %s27, 0
      %p170 = por %p168, %p169
      %s171 = ssub.s32 %s29, %s36
      %p172 = scmp.eq.s32.totalorder %s171, 0
      %s174 = sadd.s32 %s173, 1
      %s175 = scalar_select %p172, %s173, %s174
      %p178 = pneg %p172
      %p179 = scmp.eq.s32.totalorder %s21, 3
      %p180 = por %p178, %p179
      %p181 = scmp.ne.s32.totalorder %s173, %s176
      %p182 = scmp.eq.s32.totalorder %s21, 0
      %p183 = por %p181, %p182
      %p184 = scmp.ne.s32.totalorder %s173, %s176
      %p185 = scmp.eq.s32.totalorder %s26, 3
      %p186 = por %p184, %p185
      %p187 = scmp.ne.s32.totalorder %s176, %s177
      %p188 = scmp.eq.s32.totalorder %s26, 0
      %p189 = por %p187, %p188
      %p190 = scmp.ne.s32.totalorder %s176, %s177
      %p191 = scmp.eq.s32.totalorder %s27, 3
      %p192 = por %p190, %p191
      %p194 = scmp.ne.s32.totalorder %s177, %s193
      %p195 = scmp.eq.s32.totalorder %s27, 0
      %p196 = por %p194, %p195
      %s197 = ssub.s32 %s28, %s40
      %p198 = scmp.eq.s32.totalorder %s197, 0
      %s200 = sadd.s32 %s199, 1
      %s201 = scalar_select %p198, %s199, %s200
      %p204 = pneg %p198
      %p205 = scmp.eq.s32.totalorder %s21, 3
      %p206 = por %p204, %p205
      %p207 = scmp.ne.s32.totalorder %s199, %s202
      %p208 = scmp.eq.s32.totalorder %s21, 0
      %p209 = por %p207, %p208
      %p210 = scmp.ne.s32.totalorder %s199, %s202
      %p211 = scmp.eq.s32.totalorder %s26, 3
      %p212 = por %p210, %p211
      %p213 = scmp.ne.s32.totalorder %s202, %s203
      %p214 = scmp.eq.s32.totalorder %s26, 0
      %p215 = por %p213, %p214
      %p216 = scmp.ne.s32.totalorder %s202, %s203
      %p217 = scmp.eq.s32.totalorder %s27, 3
      %p218 = por %p216, %p217
      %p220 = scmp.ne.s32.totalorder %s203, %s219
      %p221 = scmp.eq.s32.totalorder %s27, 0
      %p222 = por %p220, %p221
      %p223 = scmp.le.s32.totalorder 1, %s21
      %p224 = scmp.lt.s32.totalorder %s21, 5
      %p225 = pnand %p223, %p224
      %p226 = pneg %p225
      // Predicated region
      $region9: #{tpu_custom_call.1} parent=5 // pred_check
        _
      $region10: #{tpu_custom_call.1} parent=5 // pred_check_branch
        %228 = sbr.rel (%p225) target = $region12
      $region11: #{tpu_custom_call.1} parent=5 // pred_region
        %s229 = ssub.s32 %s21, 1
      $region12: #{tpu_custom_call.1} parent=5 // pred_fallthru
        _
      %p230 = scmp.lt.s32.totalorder %s21, 4
      // Predicated region
      $region13: #{tpu_custom_call.1} parent=5 // pred_check
        %p231 = pneg %p230
      $region14: #{tpu_custom_call.1} parent=5 // pred_check_branch
        %233 = sbr.rel (%p231) target = $region16
      $region15: #{tpu_custom_call.1} parent=5 // pred_region
        // Predicated region
        $region17: #{tpu_custom_call.1} parent=15 // pred_check
          %p234 = pneg %p53
        $region18: #{tpu_custom_call.1} parent=15 // pred_check_branch
          %236 = sbr.rel (%p234) target = $region20
        $region19: #{tpu_custom_call.1} parent=15 // pred_region
          %s237 = sand.u32 %s43, 1
          %s238 = scalar_lea.sflag [#allocation3], %s237
          %s239 = sand.u32 %s43, 1
          %s240 = smul.addr %s239, 8
          %s241 = scalar_lea.vmem [#allocation2], %s240
          %s243 = ssub.s32 128, 128
          %244 = vsyncadd %s238, %s243
          %s245 = smul.addr %s28, 128
          %s246 = scalar_lea.hbm %s0, %s245
          %s248 = sshll.u32 %s241, 4
          %s249 = int_to_ptr.vmem [resolvable:$true] %s248
          %251 = dma.hbm_to_vmem [thread:$0]  %s246, 128, %s249, %s238
        $region20: #{tpu_custom_call.1} parent=15 // pred_fallthru
          _
        // Predicated region
        $region21: #{tpu_custom_call.1} parent=15 // pred_check
          %p252 = pneg %p79
        $region22: #{tpu_custom_call.1} parent=15 // pred_check_branch
          %254 = sbr.rel (%p252) target = $region24
        $region23: #{tpu_custom_call.1} parent=15 // pred_region
          %p255 = scmp.lt.s32.totalorder %s29, 1
          %s256 = scalar_select %p255, %s29, 1
          %s257 = smul.addr %s256, 4
          %s258 = smul.addr %s257, 4
          %s259 = scalar_lea.vmem %s1, %s258
        $region24: #{tpu_custom_call.1} parent=15 // pred_fallthru
          _
        // Predicated region
        $region25: #{tpu_custom_call.1} parent=15 // pred_check
          %p260 = pneg %p105
        $region26: #{tpu_custom_call.1} parent=15 // pred_check_branch
          %262 = sbr.rel (%p260) target = $region28
        $region27: #{tpu_custom_call.1} parent=15 // pred_region
          %p263 = scmp.lt.s32.totalorder %s29, 1
          %s264 = scalar_select %p263, %s29, 1
          %s265 = smul.addr %s264, 4
          %s266 = smul.addr %s265, 4
          %s267 = scalar_lea.vmem %s2, %s266
        $region28: #{tpu_custom_call.1} parent=15 // pred_fallthru
          _
        // Predicated region
        $region29: #{tpu_custom_call.1} parent=15 // pred_check
          %p268 = pneg %p131
        $region30: #{tpu_custom_call.1} parent=15 // pred_check_branch
          %270 = sbr.rel (%p268) target = $region32
        $region31: #{tpu_custom_call.1} parent=15 // pred_region
          %p271 = scmp.lt.s32.totalorder %s29, 1
          %s272 = scalar_select %p271, %s29, 1
          %s273 = smul.addr %s272, 4
          %s274 = smul.addr %s273, 4
          %s275 = scalar_lea.vmem %s3, %s274
        $region32: #{tpu_custom_call.1} parent=15 // pred_fallthru
          _
        // Predicated region
        $region33: #{tpu_custom_call.1} parent=15 // pred_check
          %p276 = pneg %p157
        $region34: #{tpu_custom_call.1} parent=15 // pred_check_branch
          %278 = sbr.rel (%p276) target = $region36
        $region35: #{tpu_custom_call.1} parent=15 // pred_region
          %p279 = scmp.lt.s32.totalorder %s29, 1
          %s280 = scalar_select %p279, %s29, 1
          %s281 = smul.addr %s280, 8
          %s282 = smul.addr %s281, 4
          %s283 = scalar_lea.vmem %s4, %s282
        $region36: #{tpu_custom_call.1} parent=15 // pred_fallthru
          _
        // Predicated region
        $region37: #{tpu_custom_call.1} parent=15 // pred_check
          %p284 = pneg %p183
        $region38: #{tpu_custom_call.1} parent=15 // pred_check_branch
          %286 = sbr.rel (%p284) target = $region40
        $region39: #{tpu_custom_call.1} parent=15 // pred_region
          %s287 = sand.u32 %s173, 1
          %s288 = scalar_lea.sflag [#allocation6], %s287
          %s289 = sand.u32 %s173, 1
          %s290 = smul.addr %s289, 8
          %s291 = scalar_lea.vmem [#allocation5], %s290
          %s293 = ssub.s32 128, 128
          %294 = vsyncadd %s288, %s293
          %s295 = smul.addr %s29, 128
          %s296 = scalar_lea.hbm %s5, %s295
          %s298 = sshll.u32 %s291, 4
          %s299 = int_to_ptr.vmem [resolvable:$true] %s298
          %301 = dma.hbm_to_vmem [thread:$0]  %s296, 128, %s299, %s288
        $region40: #{tpu_custom_call.1} parent=15 // pred_fallthru
          _
      $region16: #{tpu_custom_call.1} parent=5 // pred_fallthru
        _
      %p302 = scmp.le.s32.totalorder 1, %s21
      %p303 = scmp.lt.s32.totalorder %s21, 5
      %p304 = pnand %p302, %p303
      %p305 = pneg %p304
      // Predicated region
      $region41: #{tpu_custom_call.1} parent=5 // pred_check
        _
      $region42: #{tpu_custom_call.1} parent=5 // pred_check_branch
        %307 = sbr.rel (%p304) target = $region44
      $region43: #{tpu_custom_call.1} parent=5 // pred_region
        %s308 = ssub.s32 %s21, 1
        %s309 = sand.u32 %s46, 1
        %s310 = scalar_lea.sflag [#allocation3], %s309
        %s311 = sand.u32 %s46, 1
        %s312 = smul.addr %s311, 8
        %s313 = scalar_lea.vmem [#allocation2], %s312
        // Predicated region
        $region45: #{tpu_custom_call.1} parent=43 // pred_check
          %p314 = pneg %p59
        $region46: #{tpu_custom_call.1} parent=43 // pred_check_branch
          %316 = sbr.rel (%p314) target = $region48
        $region47: #{tpu_custom_call.1} parent=43 // pred_region
          %317 = dma.done %s310, 128
        $region48: #{tpu_custom_call.1} parent=43 // pred_fallthru
          _
        %s318 = sand.u32 %s176, 1
        %s319 = scalar_lea.sflag [#allocation6], %s318
        %s320 = sand.u32 %s176, 1
        %s321 = smul.addr %s320, 8
        %s322 = scalar_lea.vmem [#allocation5], %s321
        // Predicated region
        $region49: #{tpu_custom_call.1} parent=43 // pred_check
          %p323 = pneg %p189
        $region50: #{tpu_custom_call.1} parent=43 // pred_check_branch
          %325 = sbr.rel (%p323) target = $region52
        $region51: #{tpu_custom_call.1} parent=43 // pred_region
          %326 = dma.done %s319, 128
        $region52: #{tpu_custom_call.1} parent=43 // pred_fallthru
          _
        %s327 = sand.u32 %s46, 1
        %s328 = scalar_lea.sflag [#allocation3], %s327
        %s329 = sand.u32 %s46, 1
        %s330 = smul.addr %s329, 8
        %s331 = scalar_lea.vmem [#allocation2], %s330
        %p332 = pneg %p59
        %p333 = pneg %p56
        %p334 = scmp.lt.s32.totalorder %s31, 1
        %s335 = scalar_select %p334, %s31, 1
        %s336 = smul.addr %s335, 4
        %s337 = smul.addr %s336, 4
        %s338 = scalar_lea.vmem %s1, %s337
        %p339 = pneg %p85
        %p340 = pneg %p82
        %p341 = scmp.lt.s32.totalorder %s31, 1
        %s342 = scalar_select %p341, %s31, 1
        %s343 = smul.addr %s342, 4
        %s344 = smul.addr %s343, 4
        %s345 = scalar_lea.vmem %s2, %s344
        %p346 = pneg %p111
        %p347 = pneg %p108
        %p348 = scmp.lt.s32.totalorder %s31, 1
        %s349 = scalar_select %p348, %s31, 1
        %s350 = smul.addr %s349, 4
        %s351 = smul.addr %s350, 4
        %s352 = scalar_lea.vmem %s3, %s351
        %p353 = pneg %p137
        %p354 = pneg %p134
        %p355 = scmp.lt.s32.totalorder %s31, 1
        %s356 = scalar_select %p355, %s31, 1
        %s357 = smul.addr %s356, 8
        %s358 = smul.addr %s357, 4
        %s359 = scalar_lea.vmem %s4, %s358
        %p360 = pneg %p163
        %p361 = pneg %p160
        %s362 = sand.u32 %s176, 1
        %s363 = scalar_lea.sflag [#allocation6], %s362
        %s364 = sand.u32 %s176, 1
        %s365 = smul.addr %s364, 8
        %s366 = scalar_lea.vmem [#allocation5], %s365
        %p367 = pneg %p189
        %p368 = pneg %p186
        %p369 = pneg %p215
        %p370 = pneg %p212
        %s371 = sand.u32 %s202, 1
        %s372 = scalar_lea.sflag [#allocation4], %s371
        %s373 = sand.u32 %s202, 1
        %s374 = smul.addr %s373, 8
        %s375 = scalar_lea.vmem [#allocation7], %s374
        %p376 = scmp.lt.s32.totalorder %s31, 1
        %s377 = scalar_select %p376, %s31, 1
        %s378 = smul.addr %s377, 4
        %s379 = smul.addr %s378, 4
        %s380 = scalar_lea.vmem %s1, %s379
        %p381 = scmp.lt.s32.totalorder %s31, 1
        %s382 = scalar_select %p381, %s31, 1
        %s383 = smul.addr %s382, 4
        %s384 = smul.addr %s383, 4
        %s385 = scalar_lea.vmem %s2, %s384
        %p386 = scmp.lt.s32.totalorder %s31, 1
        %s387 = scalar_select %p386, %s31, 1
        %s388 = smul.addr %s387, 4
        %s389 = smul.addr %s388, 4
        %s390 = scalar_lea.vmem %s3, %s389
        %p391 = scmp.lt.s32.totalorder %s31, 1
        %s392 = scalar_select %p391, %s31, 1
        %s393 = smul.addr %s392, 8
        %s394 = smul.addr %s393, 4
        %s395 = scalar_lea.vmem %s4, %s394
        %p397 = scmp.eq.s32.totalorder %s31, 0
        // Predicated region
        $region53: #{tpu_custom_call.1} parent=43 // pred_check
          %p398 = pneg %p397
        $region54: #{tpu_custom_call.1} parent=43 // pred_check_branch
          %400 = sbr.rel (%p398) target = $region56
        $region55: #{tpu_custom_call.1} parent=43 // pred_region
          %v401 = vld [vmem:[%s313] sm:$0xff]
          %vm402 = vcmask 261120
          %403 = vst.msk [vmem:[%s375] sm:$0xff] %vm402, %v401
        $region56: #{tpu_custom_call.1} parent=43 // pred_fallthru
          _
        %v404 = vld [vmem:[%s375] sm:$0xff]
        %v405 = vld [vmem:[%s322] sm:$0xff]
        %v406 = vpack.c.bf16 %v404, %v404
        %v407 = vld [vmem:[%s380] sm:$0xf]
        %v408 = vld [vmem:[%s380 + $0x4] sm:$0xf]
        %v409 = vld [vmem:[%s380 + $0x8] sm:$0xf]
        %v410 = vld [vmem:[%s380 + $0xc] sm:$0xf]
        %v415 = vunpack.c.l.b16 %v407
        %v416 = vunpack.c.l.b16 %v408
        %v417 = vunpack.c.l.b16 %v409
        %v418 = vunpack.c.l.b16 %v410
        %v419 = vpack.c.b16 %v416, %v415
        %v420 = vpack.c.b16 %v418, %v417
        %vm423 = vcmask 261120
        %v425 = vsel %vm423, %v406, 0
        %427 = vmatprep.subr.bf16.mxu0 0
        %428 = vmatpush1.bf16.msra.mxu0 0
        %429 = vmatprep.subr.bf16.mxu0 0
        %430 = vmatpush1.bf16.msra.mxu0 0
        %431 = vmatprep.subr.bf16.mxu0 0
        %432 = vmatpush1.bf16.msra.mxu0 0
        %433 = vmatprep.subr.bf16.mxu0 0
        %434 = vmatpush1.bf16.msra.mxu0 0
        %435 = vmatprep.subr.bf16.mxu0 0
        %436 = vmatpush1.bf16.msra.mxu0 0
        %437 = vmatprep.subr.bf16.mxu0 0
        %438 = vmatpush1.bf16.msra.mxu0 0
        %439 = vmatprep.subr.bf16.mxu0 0
        %440 = vmatpush1.bf16.msra.mxu0 %v420
        %441 = vmatprep.subr.bf16.mxu0 0
        %442 = vmatpush1.bf16.msra.mxu0 %v419
        %443 = vmatprep.subr.bf16.mxu0 0
        %444 = vmatpush2.bf16.msra.mxu0 0
        %445 = vmatprep.subr.bf16.mxu0 0
        %446 = vmatpush2.bf16.msra.mxu0 0
        %447 = vmatprep.subr.bf16.mxu0 0
        %448 = vmatpush2.bf16.msra.mxu0 0
        %449 = vmatprep.subr.bf16.mxu0 0
        %450 = vmatpush2.bf16.msra.mxu0 0
        %451 = vmatprep.subr.bf16.mxu0 0
        %452 = vmatpush2.bf16.msra.mxu0 0
        %453 = vmatprep.subr.bf16.mxu0 0
        %454 = vmatpush2.bf16.msra.mxu0 0
        %455 = vmatprep.subr.bf16.mxu0 0
        %456 = vmatpush2.bf16.msra.mxu0 0
        %457 = vmatprep.subr.bf16.mxu0 0
        %458 = vmatpush2.bf16.msra.mxu0 0
        %459 = vmatprep.mubr.bf16.mxu0 0
        %460 = vmatmul.mubr.bf16.gmra.mxu0 %v425
        %v461 = vpop.f32.mrf.mxu0
        %v462 = vadd.f32 0.0, %v461
        %v463 = vpop.f32.mrf.mxu0
        %v464 = vpop.f32.mrf.mxu0
        %v465 = vpop.f32.mrf.mxu0
        %466 = vdwg.mxu0
        %v467 = vpack.c.bf16 %v462, %v462
        %v468 = vld [vmem:[%s385] sm:$0xf]
        %v469 = vld [vmem:[%s385 + $0x4] sm:$0xf]
        %v470 = vld [vmem:[%s385 + $0x8] sm:$0xf]
        %v471 = vld [vmem:[%s385 + $0xc] sm:$0xf]
        %473 = vrot.lane.b32.xlu0 %v467, 96
        %v474 = vpop.permute.xlu0 %473
        %vm475 = vcmask 64512
        %v477 = vsel %vm475, %v467, 0
        %v480 = vsel %vm475, %v474, 0
        %482 = vmatprep.subr.bf16.mxu0 0
        %483 = vmatpush1.bf16.xpose.msra.mxu0 0
        %484 = vmatprep.subr.bf16.mxu0 0
        %485 = vmatpush1.bf16.xpose.msra.mxu0 0
        %486 = vmatprep.subr.bf16.mxu0 0
        %487 = vmatpush1.bf16.xpose.msra.mxu0 0
        %488 = vmatprep.subr.bf16.mxu0 0
        %489 = vmatpush1.bf16.xpose.msra.mxu0 0
        %490 = vmatprep.subr.bf16.mxu0 0
        %491 = vmatpush1.bf16.xpose.msra.mxu0 0
        %492 = vmatprep.subr.bf16.mxu0 0
        %493 = vmatpush1.bf16.xpose.msra.mxu0 0
        %494 = vmatprep.subr.bf16.mxu0 0
        %495 = vmatpush1.bf16.xpose.msra.mxu0 0
        %496 = vmatprep.subr.bf16.mxu0 0
        %497 = vmatpush1.bf16.xpose.msra.mxu0 %v480
        %498 = vmatprep.subr.bf16.mxu0 0
        %499 = vmatpush2.bf16.xpose.msra.mxu0 0
        %500 = vmatprep.subr.bf16.mxu0 0
        %501 = vmatpush2.bf16.xpose.msra.mxu0 0
        %502 = vmatprep.subr.bf16.mxu0 0
        %503 = vmatpush2.bf16.xpose.msra.mxu0 0
        %504 = vmatprep.subr.bf16.mxu0 0
        %505 = vmatpush2.bf16.xpose.msra.mxu0 0
        %506 = vmatprep.subr.bf16.mxu0 0
        %507 = vmatpush2.bf16.xpose.msra.mxu0 0
        %508 = vmatprep.subr.bf16.mxu0 0
        %509 = vmatpush2.bf16.xpose.msra.mxu0 0
        %510 = vmatprep.subr.bf16.mxu0 0
        %511 = vmatpush2.bf16.xpose.msra.mxu0 0
        %512 = vmatprep.subr.bf16.mxu0 0
        %513 = vmatpush2.bf16.xpose.msra.mxu0 0
        %514 = vmatprep.mubr.bf16.mxu0 0
        %515 = vmatmul.mubr.bf16.gmra.mxu0 %v477
        %v516 = vpop.f32.mrf.mxu0
        %v517 = vadd.f32 0.0, %v516
        %v518 = vpop.f32.mrf.mxu0
        %v519 = vpop.f32.mrf.mxu0
        %v520 = vpop.f32.mrf.mxu0
        %521 = vdwg.mxu0
        %v522 = vsel %vm475, %v517, -inf
        %523 = vmax.xlane.f32.xlu0 %v522
        %v524 = vpop.xlane.xlu0 %523
        %v525 = vsub.f32 %v517, %v524
        %v526 = vmul.f32 %v525, 1.442695
        %v527 = vpow.pop %v526
        %v528 = vsel %vm475, %v527, 0.0
        %529 = vadd.xlane.f32.xlu0 %v528
        %v530 = vpop.xlane.xlu0 %529
        %v531 = vrcp.pop %v530
        %v532 = vmul.f32 %v527, %v531
        %v533 = vpack.c.bf16 %v532, %v532
        %534 = vrot.lane.b32.xlu0 %v467, 64
        %v535 = vpop.permute.xlu0 %534
        %v537 = vsel %vm475, %v533, 0
        %vm539 = vcmask 1043456
        %v541 = vsel %vm539, %v535, 0
        %543 = vmatprep.subr.bf16.mxu0 0
        %544 = vmatpush1.bf16.msra.mxu0 0
        %545 = vmatprep.subr.bf16.mxu0 0
        %546 = vmatpush1.bf16.msra.mxu0 0
        %547 = vmatprep.subr.bf16.mxu0 0
        %548 = vmatpush1.bf16.msra.mxu0 0
        %549 = vmatprep.subr.bf16.mxu0 0
        %550 = vmatpush1.bf16.msra.mxu0 0
        %551 = vmatprep.subr.bf16.mxu0 0
        %552 = vmatpush1.bf16.msra.mxu0 0
        %553 = vmatprep.subr.bf16.mxu0 0
        %554 = vmatpush1.bf16.msra.mxu0 0
        %555 = vmatprep.subr.bf16.mxu0 0
        %556 = vmatpush1.bf16.msra.mxu0 0
        %557 = vmatprep.subr.bf16.mxu0 0
        %558 = vmatpush1.bf16.msra.mxu0 %v541
        %559 = vmatprep.subr.bf16.mxu0 0
        %560 = vmatpush2.bf16.msra.mxu0 0
        %561 = vmatprep.subr.bf16.mxu0 0
        %562 = vmatpush2.bf16.msra.mxu0 0
        %563 = vmatprep.subr.bf16.mxu0 0
        %564 = vmatpush2.bf16.msra.mxu0 0
        %565 = vmatprep.subr.bf16.mxu0 0
        %566 = vmatpush2.bf16.msra.mxu0 0
        %567 = vmatprep.subr.bf16.mxu0 0
        %568 = vmatpush2.bf16.msra.mxu0 0
        %569 = vmatprep.subr.bf16.mxu0 0
        %570 = vmatpush2.bf16.msra.mxu0 0
        %571 = vmatprep.subr.bf16.mxu0 0
        %572 = vmatpush2.bf16.msra.mxu0 0
        %573 = vmatprep.subr.bf16.mxu0 0
        %574 = vmatpush2.bf16.msra.mxu0 0
        %575 = vmatprep.mubr.bf16.mxu0 0
        %576 = vmatmul.mubr.bf16.gmra.mxu0 %v537
        %v577 = vpop.f32.mrf.mxu0
        %v578 = vadd.f32 0.0, %v577
        %v579 = vpop.f32.mrf.mxu0
        %v580 = vpop.f32.mrf.mxu0
        %v581 = vpop.f32.mrf.mxu0
        %582 = vdwg.mxu0
        %v583 = vpack.c.bf16 %v578, %v578
        %584 = vrot.lane.b32.xlu0 %v467, 120
        %v585 = vpop.permute.xlu0 %584
        %586 = vrot.lane.b32.xlu0 %v467, 88
        %v587 = vpop.permute.xlu0 %586
        %v589 = vsel %vm475, %v585, 0
        %v592 = vsel %vm475, %v587, 0
        %594 = vmatprep.subr.bf16.mxu0 0
        %595 = vmatpush1.bf16.xpose.msra.mxu0 0
        %596 = vmatprep.subr.bf16.mxu0 0
        %597 = vmatpush1.bf16.xpose.msra.mxu0 0
        %598 = vmatprep.subr.bf16.mxu0 0
        %599 = vmatpush1.bf16.xpose.msra.mxu0 0
        %600 = vmatprep.subr.bf16.mxu0 0
        %601 = vmatpush1.bf16.xpose.msra.mxu0 0
        %602 = vmatprep.subr.bf16.mxu0 0
        %603 = vmatpush1.bf16.xpose.msra.mxu0 0
        %604 = vmatprep.subr.bf16.mxu0 0
        %605 = vmatpush1.bf16.xpose.msra.mxu0 0
        %606 = vmatprep.subr.bf16.mxu0 0
        %607 = vmatpush1.bf16.xpose.msra.mxu0 0
        %608 = vmatprep.subr.bf16.mxu0 0
        %609 = vmatpush1.bf16.xpose.msra.mxu0 %v592
        %610 = vmatprep.subr.bf16.mxu0 0
        %611 = vmatpush2.bf16.xpose.msra.mxu0 0
        %612 = vmatprep.subr.bf16.mxu0 0
        %613 = vmatpush2.bf16.xpose.msra.mxu0 0
        %614 = vmatprep.subr.bf16.mxu0 0
        %615 = vmatpush2.bf16.xpose.msra.mxu0 0
        %616 = vmatprep.subr.bf16.mxu0 0
        %617 = vmatpush2.bf16.xpose.msra.mxu0 0
        %618 = vmatprep.subr.bf16.mxu0 0
        %619 = vmatpush2.bf16.xpose.msra.mxu0 0
        %620 = vmatprep.subr.bf16.mxu0 0
        %621 = vmatpush2.bf16.xpose.msra.mxu0 0
        %622 = vmatprep.subr.bf16.mxu0 0
        %623 = vmatpush2.bf16.xpose.msra.mxu0 0
        %624 = vmatprep.subr.bf16.mxu0 0
        %625 = vmatpush2.bf16.xpose.msra.mxu0 0
        %626 = vmatprep.mubr.bf16.mxu0 0
        %627 = vmatmul.mubr.bf16.gmra.mxu0 %v589
        %v628 = vpop.f32.mrf.mxu0
        %v629 = vadd.f32 0.0, %v628
        %v630 = vpop.f32.mrf.mxu0
        %v631 = vpop.f32.mrf.mxu0
        %v632 = vpop.f32.mrf.mxu0
        %633 = vdwg.mxu0
        %v634 = vsel %vm475, %v629, -inf
        %635 = vmax.xlane.f32.xlu0 %v634
        %v636 = vpop.xlane.xlu0 %635
        %v637 = vsub.f32 %v629, %v636
        %v638 = vmul.f32 %v637, 1.442695
        %v639 = vpow.pop %v638
        %v640 = vsel %vm475, %v639, 0.0
        %641 = vadd.xlane.f32.xlu0 %v640
        %v642 = vpop.xlane.xlu0 %641
        %v643 = vrcp.pop %v642
        %v644 = vmul.f32 %v639, %v643
        %v645 = vpack.c.bf16 %v644, %v644
        %646 = vrot.lane.b32.xlu0 %v467, 56
        %v647 = vpop.permute.xlu0 %646
        %v649 = vsel %vm475, %v645, 0
        %v652 = vsel %vm539, %v647, 0
        %654 = vmatprep.subr.bf16.mxu0 0
        %655 = vmatpush1.bf16.msra.mxu0 0
        %656 = vmatprep.subr.bf16.mxu0 0
        %657 = vmatpush1.bf16.msra.mxu0 0
        %658 = vmatprep.subr.bf16.mxu0 0
        %659 = vmatpush1.bf16.msra.mxu0 0
        %660 = vmatprep.subr.bf16.mxu0 0
        %661 = vmatpush1.bf16.msra.mxu0 0
        %662 = vmatprep.subr.bf16.mxu0 0
        %663 = vmatpush1.bf16.msra.mxu0 0
        %664 = vmatprep.subr.bf16.mxu0 0
        %665 = vmatpush1.bf16.msra.mxu0 0
        %666 = vmatprep.subr.bf16.mxu0 0
        %667 = vmatpush1.bf16.msra.mxu0 0
        %668 = vmatprep.subr.bf16.mxu0 0
        %669 = vmatpush1.bf16.msra.mxu0 %v652
        %670 = vmatprep.subr.bf16.mxu0 0
        %671 = vmatpush2.bf16.msra.mxu0 0
        %672 = vmatprep.subr.bf16.mxu0 0
        %673 = vmatpush2.bf16.msra.mxu0 0
        %674 = vmatprep.subr.bf16.mxu0 0
        %675 = vmatpush2.bf16.msra.mxu0 0
        %676 = vmatprep.subr.bf16.mxu0 0
        %677 = vmatpush2.bf16.msra.mxu0 0
        %678 = vmatprep.subr.bf16.mxu0 0
        %679 = vmatpush2.bf16.msra.mxu0 0
        %680 = vmatprep.subr.bf16.mxu0 0
        %681 = vmatpush2.bf16.msra.mxu0 0
        %682 = vmatprep.subr.bf16.mxu0 0
        %683 = vmatpush2.bf16.msra.mxu0 0
        %684 = vmatprep.subr.bf16.mxu0 0
        %685 = vmatpush2.bf16.msra.mxu0 0
        %686 = vmatprep.mubr.bf16.mxu0 0
        %687 = vmatmul.mubr.bf16.gmra.mxu0 %v649
        %v688 = vpop.f32.mrf.mxu0
        %v689 = vadd.f32 0.0, %v688
        %v690 = vpop.f32.mrf.mxu0
        %v691 = vpop.f32.mrf.mxu0
        %v692 = vpop.f32.mrf.mxu0
        %693 = vdwg.mxu0
        %v694 = vpack.c.bf16 %v689, %v689
        %v696 = vsel %vm475, %v694, 0
        %v699 = vsel %vm539, %v469, 0
        %701 = vmatprep.subr.bf16.mxu0 0
        %702 = vmatpush1.bf16.msra.mxu0 0
        %703 = vmatprep.subr.bf16.mxu0 0
        %704 = vmatpush1.bf16.msra.mxu0 0
        %705 = vmatprep.subr.bf16.mxu0 0
        %706 = vmatpush1.bf16.msra.mxu0 0
        %707 = vmatprep.subr.bf16.mxu0 0
        %708 = vmatpush1.bf16.msra.mxu0 0
        %709 = vmatprep.subr.bf16.mxu0 0
        %710 = vmatpush1.bf16.msra.mxu0 0
        %711 = vmatprep.subr.bf16.mxu0 0
        %712 = vmatpush1.bf16.msra.mxu0 0
        %713 = vmatprep.subr.bf16.mxu0 0
        %714 = vmatpush1.bf16.msra.mxu0 0
        %715 = vmatprep.subr.bf16.mxu0 0
        %716 = vmatpush1.bf16.msra.mxu0 %v699
        %717 = vmatprep.subr.bf16.mxu0 0
        %718 = vmatpush2.bf16.msra.mxu0 0
        %719 = vmatprep.subr.bf16.mxu0 0
        %720 = vmatpush2.bf16.msra.mxu0 0
        %721 = vmatprep.subr.bf16.mxu0 0
        %722 = vmatpush2.bf16.msra.mxu0 0
        %723 = vmatprep.subr.bf16.mxu0 0
        %724 = vmatpush2.bf16.msra.mxu0 0
        %725 = vmatprep.subr.bf16.mxu0 0
        %726 = vmatpush2.bf16.msra.mxu0 0
        %727 = vmatprep.subr.bf16.mxu0 0
        %728 = vmatpush2.bf16.msra.mxu0 0
        %729 = vmatprep.subr.bf16.mxu0 0
        %730 = vmatpush2.bf16.msra.mxu0 0
        %731 = vmatprep.subr.bf16.mxu0 0
        %732 = vmatpush2.bf16.msra.mxu0 0
        %733 = vmatprep.mubr.bf16.mxu0 0
        %734 = vmatmul.mubr.bf16.gmra.mxu0 %v696
        %v735 = vpop.f32.mrf.mxu0
        %v736 = vadd.f32 0.0, %v735
        %v737 = vpop.f32.mrf.mxu0
        %v738 = vpop.f32.mrf.mxu0
        %v739 = vpop.f32.mrf.mxu0
        %740 = vdwg.mxu0
        %v742 = vsel %vm475, %v583, 0
        %v745 = vsel %vm539, %v468, 0
        %747 = vmatprep.subr.bf16.mxu0 0
        %748 = vmatpush1.bf16.msra.mxu0 0
        %749 = vmatprep.subr.bf16.mxu0 0
        %750 = vmatpush1.bf16.msra.mxu0 0
        %751 = vmatprep.subr.bf16.mxu0 0
        %752 = vmatpush1.bf16.msra.mxu0 0
        %753 = vmatprep.subr.bf16.mxu0 0
        %754 = vmatpush1.bf16.msra.mxu0 0
        %755 = vmatprep.subr.bf16.mxu0 0
        %756 = vmatpush1.bf16.msra.mxu0 0
        %757 = vmatprep.subr.bf16.mxu0 0
        %758 = vmatpush1.bf16.msra.mxu0 0
        %759 = vmatprep.subr.bf16.mxu0 0
        %760 = vmatpush1.bf16.msra.mxu0 0
        %761 = vmatprep.subr.bf16.mxu0 0
        %762 = vmatpush1.bf16.msra.mxu0 %v745
        %763 = vmatprep.subr.bf16.mxu0 0
        %764 = vmatpush2.bf16.msra.mxu0 0
        %765 = vmatprep.subr.bf16.mxu0 0
        %766 = vmatpush2.bf16.msra.mxu0 0
        %767 = vmatprep.subr.bf16.mxu0 0
        %768 = vmatpush2.bf16.msra.mxu0 0
        %769 = vmatprep.subr.bf16.mxu0 0
        %770 = vmatpush2.bf16.msra.mxu0 0
        %771 = vmatprep.subr.bf16.mxu0 0
        %772 = vmatpush2.bf16.msra.mxu0 0
        %773 = vmatprep.subr.bf16.mxu0 0
        %774 = vmatpush2.bf16.msra.mxu0 0
        %775 = vmatprep.subr.bf16.mxu0 0
        %776 = vmatpush2.bf16.msra.mxu0 0
        %777 = vmatprep.subr.bf16.mxu0 0
        %778 = vmatpush2.bf16.msra.mxu0 0
        %779 = vmatprep.mubr.bf16.mxu0 0
        %780 = vmatmul.mubr.bf16.gmra.mxu0 %v742
        %v781 = vpop.f32.mrf.mxu0
        %v782 = vadd.f32 %v736, %v781
        %v783 = vpop.f32.mrf.mxu0
        %v784 = vpop.f32.mrf.mxu0
        %v785 = vpop.f32.mrf.mxu0
        %786 = vdwg.mxu0
        %787 = vrot.lane.b32.xlu0 %v467, 112
        %v788 = vpop.permute.xlu0 %787
        %789 = vrot.lane.b32.xlu0 %v467, 80
        %v790 = vpop.permute.xlu0 %789
        %v792 = vsel %vm475, %v788, 0
        %v795 = vsel %vm475, %v790, 0
        %797 = vmatprep.subr.bf16.mxu0 0
        %798 = vmatpush1.bf16.xpose.msra.mxu0 0
        %799 = vmatprep.subr.bf16.mxu0 0
        %800 = vmatpush1.bf16.xpose.msra.mxu0 0
        %801 = vmatprep.subr.bf16.mxu0 0
        %802 = vmatpush1.bf16.xpose.msra.mxu0 0
        %803 = vmatprep.subr.bf16.mxu0 0
        %804 = vmatpush1.bf16.xpose.msra.mxu0 0
        %805 = vmatprep.subr.bf16.mxu0 0
        %806 = vmatpush1.bf16.xpose.msra.mxu0 0
        %807 = vmatprep.subr.bf16.mxu0 0
        %808 = vmatpush1.bf16.xpose.msra.mxu0 0
        %809 = vmatprep.subr.bf16.mxu0 0
        %810 = vmatpush1.bf16.xpose.msra.mxu0 0
        %811 = vmatprep.subr.bf16.mxu0 0
        %812 = vmatpush1.bf16.xpose.msra.mxu0 %v795
        %813 = vmatprep.subr.bf16.mxu0 0
        %814 = vmatpush2.bf16.xpose.msra.mxu0 0
        %815 = vmatprep.subr.bf16.mxu0 0
        %816 = vmatpush2.bf16.xpose.msra.mxu0 0
        %817 = vmatprep.subr.bf16.mxu0 0
        %818 = vmatpush2.bf16.xpose.msra.mxu0 0
        %819 = vmatprep.subr.bf16.mxu0 0
        %820 = vmatpush2.bf16.xpose.msra.mxu0 0
        %821 = vmatprep.subr.bf16.mxu0 0
        %822 = vmatpush2.bf16.xpose.msra.mxu0 0
        %823 = vmatprep.subr.bf16.mxu0 0
        %824 = vmatpush2.bf16.xpose.msra.mxu0 0
        %825 = vmatprep.subr.bf16.mxu0 0
        %826 = vmatpush2.bf16.xpose.msra.mxu0 0
        %827 = vmatprep.subr.bf16.mxu0 0
        %828 = vmatpush2.bf16.xpose.msra.mxu0 0
        %829 = vmatprep.mubr.bf16.mxu0 0
        %830 = vmatmul.mubr.bf16.gmra.mxu0 %v792
        %v831 = vpop.f32.mrf.mxu0
        %v832 = vadd.f32 0.0, %v831
        %v833 = vpop.f32.mrf.mxu0
        %v834 = vpop.f32.mrf.mxu0
        %v835 = vpop.f32.mrf.mxu0
        %836 = vdwg.mxu0
        %v837 = vsel %vm475, %v832, -inf
        %838 = vmax.xlane.f32.xlu0 %v837
        %v839 = vpop.xlane.xlu0 %838
        %v840 = vsub.f32 %v832, %v839
        %v841 = vmul.f32 %v840, 1.442695
        %v842 = vpow.pop %v841
        %v843 = vsel %vm475, %v842, 0.0
        %844 = vadd.xlane.f32.xlu0 %v843
        %v845 = vpop.xlane.xlu0 %844
        %v846 = vrcp.pop %v845
        %v847 = vmul.f32 %v842, %v846
        %v848 = vpack.c.bf16 %v847, %v847
        %849 = vrot.lane.b32.xlu0 %v467, 48
        %v850 = vpop.permute.xlu0 %849
        %v852 = vsel %vm475, %v848, 0
        %v855 = vsel %vm539, %v850, 0
        %857 = vmatprep.subr.bf16.mxu0 0
        %858 = vmatpush1.bf16.msra.mxu0 0
        %859 = vmatprep.subr.bf16.mxu0 0
        %860 = vmatpush1.bf16.msra.mxu0 0
        %861 = vmatprep.subr.bf16.mxu0 0
        %862 = vmatpush1.bf16.msra.mxu0 0
        %863 = vmatprep.subr.bf16.mxu0 0
        %864 = vmatpush1.bf16.msra.mxu0 0
        %865 = vmatprep.subr.bf16.mxu0 0
        %866 = vmatpush1.bf16.msra.mxu0 0
        %867 = vmatprep.subr.bf16.mxu0 0
        %868 = vmatpush1.bf16.msra.mxu0 0
        %869 = vmatprep.subr.bf16.mxu0 0
        %870 = vmatpush1.bf16.msra.mxu0 0
        %871 = vmatprep.subr.bf16.mxu0 0
        %872 = vmatpush1.bf16.msra.mxu0 %v855
        %873 = vmatprep.subr.bf16.mxu0 0
        %874 = vmatpush2.bf16.msra.mxu0 0
        %875 = vmatprep.subr.bf16.mxu0 0
        %876 = vmatpush2.bf16.msra.mxu0 0
        %877 = vmatprep.subr.bf16.mxu0 0
        %878 = vmatpush2.bf16.msra.mxu0 0
        %879 = vmatprep.subr.bf16.mxu0 0
        %880 = vmatpush2.bf16.msra.mxu0 0
        %881 = vmatprep.subr.bf16.mxu0 0
        %882 = vmatpush2.bf16.msra.mxu0 0
        %883 = vmatprep.subr.bf16.mxu0 0
        %884 = vmatpush2.bf16.msra.mxu0 0
        %885 = vmatprep.subr.bf16.mxu0 0
        %886 = vmatpush2.bf16.msra.mxu0 0
        %887 = vmatprep.subr.bf16.mxu0 0
        %888 = vmatpush2.bf16.msra.mxu0 0
        %889 = vmatprep.mubr.bf16.mxu0 0
        %890 = vmatmul.mubr.bf16.gmra.mxu0 %v852
        %v891 = vpop.f32.mrf.mxu0
        %v892 = vadd.f32 0.0, %v891
        %v893 = vpop.f32.mrf.mxu0
        %v894 = vpop.f32.mrf.mxu0
        %v895 = vpop.f32.mrf.mxu0
        %896 = vdwg.mxu0
        %v897 = vpack.c.bf16 %v892, %v892
        %v899 = vsel %vm475, %v897, 0
        %v902 = vsel %vm539, %v470, 0
        %904 = vmatprep.subr.bf16.mxu0 0
        %905 = vmatpush1.bf16.msra.mxu0 0
        %906 = vmatprep.subr.bf16.mxu0 0
        %907 = vmatpush1.bf16.msra.mxu0 0
        %908 = vmatprep.subr.bf16.mxu0 0
        %909 = vmatpush1.bf16.msra.mxu0 0
        %910 = vmatprep.subr.bf16.mxu0 0
        %911 = vmatpush1.bf16.msra.mxu0 0
        %912 = vmatprep.subr.bf16.mxu0 0
        %913 = vmatpush1.bf16.msra.mxu0 0
        %914 = vmatprep.subr.bf16.mxu0 0
        %915 = vmatpush1.bf16.msra.mxu0 0
        %916 = vmatprep.subr.bf16.mxu0 0
        %917 = vmatpush1.bf16.msra.mxu0 0
        %918 = vmatprep.subr.bf16.mxu0 0
        %919 = vmatpush1.bf16.msra.mxu0 %v902
        %920 = vmatprep.subr.bf16.mxu0 0
        %921 = vmatpush2.bf16.msra.mxu0 0
        %922 = vmatprep.subr.bf16.mxu0 0
        %923 = vmatpush2.bf16.msra.mxu0 0
        %924 = vmatprep.subr.bf16.mxu0 0
        %925 = vmatpush2.bf16.msra.mxu0 0
        %926 = vmatprep.subr.bf16.mxu0 0
        %927 = vmatpush2.bf16.msra.mxu0 0
        %928 = vmatprep.subr.bf16.mxu0 0
        %929 = vmatpush2.bf16.msra.mxu0 0
        %930 = vmatprep.subr.bf16.mxu0 0
        %931 = vmatpush2.bf16.msra.mxu0 0
        %932 = vmatprep.subr.bf16.mxu0 0
        %933 = vmatpush2.bf16.msra.mxu0 0
        %934 = vmatprep.subr.bf16.mxu0 0
        %935 = vmatpush2.bf16.msra.mxu0 0
        %936 = vmatprep.mubr.bf16.mxu0 0
        %937 = vmatmul.mubr.bf16.gmra.mxu0 %v899
        %v938 = vpop.f32.mrf.mxu0
        %v939 = vadd.f32 0.0, %v938
        %v940 = vpop.f32.mrf.mxu0
        %v941 = vpop.f32.mrf.mxu0
        %v942 = vpop.f32.mrf.mxu0
        %943 = vdwg.mxu0
        %v944 = vadd.f32 %v782, %v939
        %945 = vrot.lane.b32.xlu0 %v467, 104
        %v946 = vpop.permute.xlu0 %945
        %947 = vrot.lane.b32.xlu0 %v467, 72
        %v948 = vpop.permute.xlu0 %947
        %v950 = vsel %vm475, %v946, 0
        %v953 = vsel %vm475, %v948, 0
        %955 = vmatprep.subr.bf16.mxu0 0
        %956 = vmatpush1.bf16.xpose.msra.mxu0 0
        %957 = vmatprep.subr.bf16.mxu0 0
        %958 = vmatpush1.bf16.xpose.msra.mxu0 0
        %959 = vmatprep.subr.bf16.mxu0 0
        %960 = vmatpush1.bf16.xpose.msra.mxu0 0
        %961 = vmatprep.subr.bf16.mxu0 0
        %962 = vmatpush1.bf16.xpose.msra.mxu0 0
        %963 = vmatprep.subr.bf16.mxu0 0
        %964 = vmatpush1.bf16.xpose.msra.mxu0 0
        %965 = vmatprep.subr.bf16.mxu0 0
        %966 = vmatpush1.bf16.xpose.msra.mxu0 0
        %967 = vmatprep.subr.bf16.mxu0 0
        %968 = vmatpush1.bf16.xpose.msra.mxu0 0
        %969 = vmatprep.subr.bf16.mxu0 0
        %970 = vmatpush1.bf16.xpose.msra.mxu0 %v953
        %971 = vmatprep.subr.bf16.mxu0 0
        %972 = vmatpush2.bf16.xpose.msra.mxu0 0
        %973 = vmatprep.subr.bf16.mxu0 0
        %974 = vmatpush2.bf16.xpose.msra.mxu0 0
        %975 = vmatprep.subr.bf16.mxu0 0
        %976 = vmatpush2.bf16.xpose.msra.mxu0 0
        %977 = vmatprep.subr.bf16.mxu0 0
        %978 = vmatpush2.bf16.xpose.msra.mxu0 0
        %979 = vmatprep.subr.bf16.mxu0 0
        %980 = vmatpush2.bf16.xpose.msra.mxu0 0
        %981 = vmatprep.subr.bf16.mxu0 0
        %982 = vmatpush2.bf16.xpose.msra.mxu0 0
        %983 = vmatprep.subr.bf16.mxu0 0
        %984 = vmatpush2.bf16.xpose.msra.mxu0 0
        %985 = vmatprep.subr.bf16.mxu0 0
        %986 = vmatpush2.bf16.xpose.msra.mxu0 0
        %987 = vmatprep.mubr.bf16.mxu0 0
        %988 = vmatmul.mubr.bf16.gmra.mxu0 %v950
        %v989 = vpop.f32.mrf.mxu0
        %v990 = vadd.f32 0.0, %v989
        %v991 = vpop.f32.mrf.mxu0
        %v992 = vpop.f32.mrf.mxu0
        %v993 = vpop.f32.mrf.mxu0
        %994 = vdwg.mxu0
        %v995 = vsel %vm475, %v990, -inf
        %996 = vmax.xlane.f32.xlu0 %v995
        %v997 = vpop.xlane.xlu0 %996
        %v998 = vsub.f32 %v990, %v997
        %v999 = vmul.f32 %v998, 1.442695
        %v1000 = vpow.pop %v999
        %v1001 = vsel %vm475, %v1000, 0.0
        %1002 = vadd.xlane.f32.xlu0 %v1001
        %v1003 = vpop.xlane.xlu0 %1002
        %v1004 = vrcp.pop %v1003
        %v1005 = vmul.f32 %v1000, %v1004
        %v1006 = vpack.c.bf16 %v1005, %v1005
        %1007 = vrot.lane.b32.xlu0 %v467, 40
        %v1008 = vpop.permute.xlu0 %1007
        %v1010 = vsel %vm475, %v1006, 0
        %v1013 = vsel %vm539, %v1008, 0
        %1015 = vmatprep.subr.bf16.mxu0 0
        %1016 = vmatpush1.bf16.msra.mxu0 0
        %1017 = vmatprep.subr.bf16.mxu0 0
        %1018 = vmatpush1.bf16.msra.mxu0 0
        %1019 = vmatprep.subr.bf16.mxu0 0
        %1020 = vmatpush1.bf16.msra.mxu0 0
        %1021 = vmatprep.subr.bf16.mxu0 0
        %1022 = vmatpush1.bf16.msra.mxu0 0
        %1023 = vmatprep.subr.bf16.mxu0 0
        %1024 = vmatpush1.bf16.msra.mxu0 0
        %1025 = vmatprep.subr.bf16.mxu0 0
        %1026 = vmatpush1.bf16.msra.mxu0 0
        %1027 = vmatprep.subr.bf16.mxu0 0
        %1028 = vmatpush1.bf16.msra.mxu0 0
        %1029 = vmatprep.subr.bf16.mxu0 0
        %1030 = vmatpush1.bf16.msra.mxu0 %v1013
        %1031 = vmatprep.subr.bf16.mxu0 0
        %1032 = vmatpush2.bf16.msra.mxu0 0
        %1033 = vmatprep.subr.bf16.mxu0 0
        %1034 = vmatpush2.bf16.msra.mxu0 0
        %1035 = vmatprep.subr.bf16.mxu0 0
        %1036 = vmatpush2.bf16.msra.mxu0 0
        %1037 = vmatprep.subr.bf16.mxu0 0
        %1038 = vmatpush2.bf16.msra.mxu0 0
        %1039 = vmatprep.subr.bf16.mxu0 0
        %1040 = vmatpush2.bf16.msra.mxu0 0
        %1041 = vmatprep.subr.bf16.mxu0 0
        %1042 = vmatpush2.bf16.msra.mxu0 0
        %1043 = vmatprep.subr.bf16.mxu0 0
        %1044 = vmatpush2.bf16.msra.mxu0 0
        %1045 = vmatprep.subr.bf16.mxu0 0
        %1046 = vmatpush2.bf16.msra.mxu0 0
        %1047 = vmatprep.mubr.bf16.mxu0 0
        %1048 = vmatmul.mubr.bf16.gmra.mxu0 %v1010
        %v1049 = vpop.f32.mrf.mxu0
        %v1050 = vadd.f32 0.0, %v1049
        %v1051 = vpop.f32.mrf.mxu0
        %v1052 = vpop.f32.mrf.mxu0
        %v1053 = vpop.f32.mrf.mxu0
        %1054 = vdwg.mxu0
        %v1055 = vpack.c.bf16 %v1050, %v1050
        %v1057 = vsel %vm475, %v1055, 0
        %v1060 = vsel %vm539, %v471, 0
        %1062 = vmatprep.subr.bf16.mxu0 0
        %1063 = vmatpush1.bf16.msra.mxu0 0
        %1064 = vmatprep.subr.bf16.mxu0 0
        %1065 = vmatpush1.bf16.msra.mxu0 0
        %1066 = vmatprep.subr.bf16.mxu0 0
        %1067 = vmatpush1.bf16.msra.mxu0 0
        %1068 = vmatprep.subr.bf16.mxu0 0
        %1069 = vmatpush1.bf16.msra.mxu0 0
        %1070 = vmatprep.subr.bf16.mxu0 0
        %1071 = vmatpush1.bf16.msra.mxu0 0
        %1072 = vmatprep.subr.bf16.mxu0 0
        %1073 = vmatpush1.bf16.msra.mxu0 0
        %1074 = vmatprep.subr.bf16.mxu0 0
        %1075 = vmatpush1.bf16.msra.mxu0 0
        %1076 = vmatprep.subr.bf16.mxu0 0
        %1077 = vmatpush1.bf16.msra.mxu0 %v1060
        %1078 = vmatprep.subr.bf16.mxu0 0
        %1079 = vmatpush2.bf16.msra.mxu0 0
        %1080 = vmatprep.subr.bf16.mxu0 0
        %1081 = vmatpush2.bf16.msra.mxu0 0
        %1082 = vmatprep.subr.bf16.mxu0 0
        %1083 = vmatpush2.bf16.msra.mxu0 0
        %1084 = vmatprep.subr.bf16.mxu0 0
        %1085 = vmatpush2.bf16.msra.mxu0 0
        %1086 = vmatprep.subr.bf16.mxu0 0
        %1087 = vmatpush2.bf16.msra.mxu0 0
        %1088 = vmatprep.subr.bf16.mxu0 0
        %1089 = vmatpush2.bf16.msra.mxu0 0
        %1090 = vmatprep.subr.bf16.mxu0 0
        %1091 = vmatpush2.bf16.msra.mxu0 0
        %1092 = vmatprep.subr.bf16.mxu0 0
        %1093 = vmatpush2.bf16.msra.mxu0 0
        %1094 = vmatprep.mubr.bf16.mxu0 0
        %1095 = vmatmul.mubr.bf16.gmra.mxu0 %v1057
        %v1096 = vpop.f32.mrf.mxu0
        %v1097 = vadd.f32 0.0, %v1096
        %v1098 = vpop.f32.mrf.mxu0
        %v1099 = vpop.f32.mrf.mxu0
        %v1100 = vpop.f32.mrf.mxu0
        %1101 = vdwg.mxu0
        %v1102 = vadd.f32 %v944, %v1097
        %v1103 = vadd.f32 %v1102, %v404
        %v1104 = vsel %vm423, %v1103, 0.0
        %1105 = vadd.xlane.f32.xlu0 %v1104
        %v1106 = vpop.xlane.xlu0 %1105
        %v1107 = vrcp.pop 32.0
        %v1108 = vmul.f32 %v1106, %v1107
        %v1109 = vsub.f32 %v1103, %v1108
        %v1110 = vmul.f32 %v1109, %v1109
        %v1111 = vsel %vm423, %v1110, 0.0
        %1112 = vadd.xlane.f32.xlu0 %v1111
        %v1113 = vpop.xlane.xlu0 %1112
        %v1114 = vmul.f32 %v1113, %v1107
        %v1115 = vadd.f32 %v1114, 1e-05
        %v1116 = vrsqrt.pop %v1115
        %v1117 = vmul.f32 %v1109, %v1116
        %v1118 = vlaneseq
        %v1119 = vshrl.u32 %v1118, 7
        %v1120 = vsub.s32 2, %v1119
        %v1121 = vrot.slane %v405, %v1120
        %v1122 = vmul.f32 %v1117, %v1121
        %v1123 = vlaneseq
        %v1124 = vshrl.u32 %v1123, 7
        %v1125 = vsub.s32 3, %v1124
        %v1126 = vrot.slane %v405, %v1125
        %v1127 = vadd.f32 %v1122, %v1126
        %v1128 = vpack.c.bf16 %v1127, %v1127
        %v1129 = vld [vmem:[%s390] sm:$0xf]
        %v1130 = vld [vmem:[%s390 + $0x4] sm:$0xf]
        %v1131 = vld [vmem:[%s390 + $0x8] sm:$0xf]
        %v1132 = vld [vmem:[%s390 + $0xc] sm:$0xf]
        %v1133 = vlaneseq
        %v1134 = vshrl.u32 %v1133, 7
        %v1135 = vsub.s32 0, %v1134
        %v1136 = vrot.slane %v405, %v1135
        %v1141 = vunpack.c.l.b16 %v1129
        %v1142 = vunpack.c.l.b16 %v1130
        %v1143 = vunpack.c.l.b16 %v1131
        %v1144 = vunpack.c.l.b16 %v1132
        %v1145 = vpack.c.b16 %v1142, %v1141
        %v1146 = vpack.c.b16 %v1144, %v1143
        %v1150 = vsel %vm423, %v1128, 0
        %1152 = vmatprep.subr.bf16.mxu0 0
        %1153 = vmatpush1.bf16.msra.mxu0 0
        %1154 = vmatprep.subr.bf16.mxu0 0
        %1155 = vmatpush1.bf16.msra.mxu0 0
        %1156 = vmatprep.subr.bf16.mxu0 0
        %1157 = vmatpush1.bf16.msra.mxu0 0
        %1158 = vmatprep.subr.bf16.mxu0 0
        %1159 = vmatpush1.bf16.msra.mxu0 0
        %1160 = vmatprep.subr.bf16.mxu0 0
        %1161 = vmatpush1.bf16.msra.mxu0 0
        %1162 = vmatprep.subr.bf16.mxu0 0
        %1163 = vmatpush1.bf16.msra.mxu0 0
        %1164 = vmatprep.subr.bf16.mxu0 0
        %1165 = vmatpush1.bf16.msra.mxu0 %v1146
        %1166 = vmatprep.subr.bf16.mxu0 0
        %1167 = vmatpush1.bf16.msra.mxu0 %v1145
        %1168 = vmatprep.subr.bf16.mxu0 0
        %1169 = vmatpush2.bf16.msra.mxu0 0
        %1170 = vmatprep.subr.bf16.mxu0 0
        %1171 = vmatpush2.bf16.msra.mxu0 0
        %1172 = vmatprep.subr.bf16.mxu0 0
        %1173 = vmatpush2.bf16.msra.mxu0 0
        %1174 = vmatprep.subr.bf16.mxu0 0
        %1175 = vmatpush2.bf16.msra.mxu0 0
        %1176 = vmatprep.subr.bf16.mxu0 0
        %1177 = vmatpush2.bf16.msra.mxu0 0
        %1178 = vmatprep.subr.bf16.mxu0 0
        %1179 = vmatpush2.bf16.msra.mxu0 0
        %1180 = vmatprep.subr.bf16.mxu0 0
        %1181 = vmatpush2.bf16.msra.mxu0 0
        %1182 = vmatprep.subr.bf16.mxu0 0
        %1183 = vmatpush2.bf16.msra.mxu0 0
        %1184 = vmatprep.mubr.bf16.mxu0 0
        %1185 = vmatmul.mubr.bf16.gmra.mxu0 %v1150
        %v1186 = vpop.f32.mrf.mxu0
        %v1187 = vadd.f32 %v1136, %v1186
        %v1188 = vpop.f32.mrf.mxu0
        %v1189 = vpop.f32.mrf.mxu0
        %v1190 = vpop.f32.mrf.mxu0
        %1191 = vdwg.mxu0
        %v1192 = vmax.f32 %v1187, 0.0
        %v1193 = vpack.c.bf16 %v1192, %v1192
        %v1194 = vld [vmem:[%s395] sm:$0xf]
        %v1195 = vld [vmem:[%s395 + $0x4] sm:$0xf]
        %v1196 = vld [vmem:[%s395 + $0x8] sm:$0xf]
        %v1197 = vld [vmem:[%s395 + $0xc] sm:$0xf]
        %v1198 = vld [vmem:[%s395 + $0x10] sm:$0xf]
        %v1199 = vld [vmem:[%s395 + $0x14] sm:$0xf]
        %v1200 = vld [vmem:[%s395 + $0x18] sm:$0xf]
        %v1201 = vld [vmem:[%s395 + $0x1c] sm:$0xf]
        %v1202 = vlaneseq
        %v1203 = vshrl.u32 %v1202, 7
        %v1204 = vsub.s32 1, %v1203
        %v1205 = vrot.slane %v405, %v1204
        %v1214 = vunpack.c.l.b16 %v1194
        %v1215 = vunpack.c.l.b16 %v1195
        %v1216 = vunpack.c.l.b16 %v1196
        %v1217 = vunpack.c.l.b16 %v1197
        %v1218 = vunpack.c.l.b16 %v1198
        %v1219 = vunpack.c.l.b16 %v1199
        %v1220 = vunpack.c.l.b16 %v1200
        %v1221 = vunpack.c.l.b16 %v1201
        %v1222 = vpack.c.b16 %v1215, %v1214
        %v1223 = vpack.c.b16 %v1217, %v1216
        %v1224 = vpack.c.b16 %v1219, %v1218
        %v1225 = vpack.c.b16 %v1221, %v1220
        %vm1230 = vcmask 523264
        %v1232 = vsel %vm1230, %v1193, 0
        %1234 = vmatprep.subr.bf16.mxu0 0
        %1235 = vmatpush1.bf16.msra.mxu0 0
        %1236 = vmatprep.subr.bf16.mxu0 0
        %1237 = vmatpush1.bf16.msra.mxu0 0
        %1238 = vmatprep.subr.bf16.mxu0 0
        %1239 = vmatpush1.bf16.msra.mxu0 0
        %1240 = vmatprep.subr.bf16.mxu0 0
        %1241 = vmatpush1.bf16.msra.mxu0 0
        %1242 = vmatprep.subr.bf16.mxu0 0
        %1243 = vmatpush1.bf16.msra.mxu0 %v1225
        %1244 = vmatprep.subr.bf16.mxu0 0
        %1245 = vmatpush1.bf16.msra.mxu0 %v1224
        %1246 = vmatprep.subr.bf16.mxu0 0
        %1247 = vmatpush1.bf16.msra.mxu0 %v1223
        %1248 = vmatprep.subr.bf16.mxu0 0
        %1249 = vmatpush1.bf16.msra.mxu0 %v1222
        %1250 = vmatprep.subr.bf16.mxu0 0
        %1251 = vmatpush2.bf16.msra.mxu0 0
        %1252 = vmatprep.subr.bf16.mxu0 0
        %1253 = vmatpush2.bf16.msra.mxu0 0
        %1254 = vmatprep.subr.bf16.mxu0 0
        %1255 = vmatpush2.bf16.msra.mxu0 0
        %1256 = vmatprep.subr.bf16.mxu0 0
        %1257 = vmatpush2.bf16.msra.mxu0 0
        %1258 = vmatprep.subr.bf16.mxu0 0
        %1259 = vmatpush2.bf16.msra.mxu0 0
        %1260 = vmatprep.subr.bf16.mxu0 0
        %1261 = vmatpush2.bf16.msra.mxu0 0
        %1262 = vmatprep.subr.bf16.mxu0 0
        %1263 = vmatpush2.bf16.msra.mxu0 0
        %1264 = vmatprep.subr.bf16.mxu0 0
        %1265 = vmatpush2.bf16.msra.mxu0 0
        %1266 = vmatprep.mubr.bf16.mxu0 0
        %1267 = vmatmul.mubr.bf16.gmra.mxu0 %v1232
        %v1268 = vpop.f32.mrf.mxu0
        %v1269 = vadd.f32 %v1205, %v1268
        %v1270 = vpop.f32.mrf.mxu0
        %v1271 = vpop.f32.mrf.mxu0
        %v1272 = vpop.f32.mrf.mxu0
        %1273 = vdwg.mxu0
        %v1274 = vadd.f32 %v1269, %v1127
        %v1275 = vsel %vm423, %v1274, 0.0
        %1276 = vadd.xlane.f32.xlu0 %v1275
        %v1277 = vpop.xlane.xlu0 %1276
        %v1278 = vmul.f32 %v1277, %v1107
        %v1279 = vsub.f32 %v1274, %v1278
        %v1280 = vmul.f32 %v1279, %v1279
        %v1281 = vsel %vm423, %v1280, 0.0
        %1282 = vadd.xlane.f32.xlu0 %v1281
        %v1283 = vpop.xlane.xlu0 %1282
        %v1284 = vmul.f32 %v1283, %v1107
        %v1285 = vadd.f32 %v1284, 1e-05
        %v1286 = vrsqrt.pop %v1285
        %v1287 = vmul.f32 %v1279, %v1286
        %v1288 = vlaneseq
        %v1289 = vshrl.u32 %v1288, 7
        %v1290 = vsub.s32 4, %v1289
        %v1291 = vrot.slane %v405, %v1290
        %v1292 = vmul.f32 %v1287, %v1291
        %v1293 = vlaneseq
        %v1294 = vshrl.u32 %v1293, 7
        %v1295 = vsub.s32 5, %v1294
        %v1296 = vrot.slane %v405, %v1295
        %v1297 = vadd.f32 %v1292, %v1296
        %1298 = vst.msk [vmem:[%s375] sm:$0xff] %vm423, %v1297
        %s1299 = sand.u32 %s202, 1
        %s1300 = scalar_lea.sflag [#allocation4], %s1299
        %s1301 = sand.u32 %s202, 1
        %s1302 = smul.addr %s1301, 8
        %s1303 = scalar_lea.vmem [#allocation7], %s1302
        // Predicated region
        $region57: #{tpu_custom_call.1} parent=43 // pred_check
          %p1304 = pneg %p212
        $region58: #{tpu_custom_call.1} parent=43 // pred_check_branch
          %1306 = sbr.rel (%p1304) target = $region60
        $region59: #{tpu_custom_call.1} parent=43 // pred_region
          %s1308 = ssub.s32 128, 128
          %1309 = vsyncadd %s1300, %s1308
          %s1310 = smul.addr %s30, 128
          %s1311 = scalar_lea.hbm %s6, %s1310
          %s1313 = sshll.u32 %s1303, 4
          %s1314 = int_to_ptr.vmem [resolvable:$true] %s1313
          %1316 = dma.vmem_to_hbm [thread:$0]  %s1314, 128, %s1311, %s1300
        $region60: #{tpu_custom_call.1} parent=43 // pred_fallthru
          _
      $region44: #{tpu_custom_call.1} parent=5 // pred_fallthru
        _
      %p1317 = scmp.le.s32.totalorder 2, %s21
      // Predicated region
      $region61: #{tpu_custom_call.1} parent=5 // pred_check
        %p1318 = pneg %p1317
      $region62: #{tpu_custom_call.1} parent=5 // pred_check_branch
        %1320 = sbr.rel (%p1318) target = $region64
      $region63: #{tpu_custom_call.1} parent=5 // pred_region
        %s1321 = ssub.s32 %s21, 2
        // Predicated region
        $region65: #{tpu_custom_call.1} parent=63 // pred_check
          %p1322 = pneg %p218
        $region66: #{tpu_custom_call.1} parent=63 // pred_check_branch
          %1324 = sbr.rel (%p1322) target = $region68
        $region67: #{tpu_custom_call.1} parent=63 // pred_region
          %s1325 = sand.u32 %s203, 1
          %s1326 = scalar_lea.sflag [#allocation4], %s1325
          %s1327 = sand.u32 %s203, 1
          %s1328 = smul.addr %s1327, 8
          %s1329 = scalar_lea.vmem [#allocation7], %s1328
          %1330 = dma.done %s1326, 128
        $region68: #{tpu_custom_call.1} parent=63 // pred_fallthru
          _
      $region64: #{tpu_custom_call.1} parent=5 // pred_fallthru
        _
    $region6: #{tpu_custom_call.1} parent=1 // loop_footer
      %s25 = sadd.s32 1, %s21
    $region7: #{tpu_custom_call.1} parent=1 // loop_footer_branch
      %20 = sbr.rel target = $region3
    $region8: #{tpu_custom_call.1} parent=1 // loop_exit
      _
    %1331 = vsyncpa [#allocation3], 1
    %s1332 = scalar_lea.sflag [#allocation3], 1
    %1333 = vsyncpa %s1332, 1
    %1334 = vsyncpa [#allocation6], 1
    %s1335 = scalar_lea.sflag [#allocation6], 1
    %1336 = vsyncpa %s1335, 1
    %1337 = vsyncpa [#allocation4], 1
    %s1338 = scalar_lea.sflag [#allocation4], 1
    %1339 = vsyncpa %s1338, 1

</llo_original>
